<compile_context>
chip_gen: v7x
topology: tpu7x:2x2x1
jax: 0.10.0
libtpu: 0.0.40
codegen_flags: <defaults>
</compile_context>

<pallas_src>
import math
import functools

import jax
import jax.numpy as jnp
from jax.experimental import pallas as pl
from jax.experimental.pallas import tpu as pltpu


# ----------------------------------------------------------------------------
# tiling helper
# ----------------------------------------------------------------------------
def _tile(dim, target, aligns):
    """Largest tile <= target that divides `dim` and is a multiple of one of
    `aligns` (tried in order); falls back to the full dim (always legal)."""
    if dim <= target:
        return dim
    for a in aligns:
        t = (target // a) * a
        while t >= a:
            if dim % t == 0:
                return t
            t -= a
    return dim


# ----------------------------------------------------------------------------
# Tiled linear: o = act(x @ w (+ b)); bf16 MXU inputs, f32 VMEM accumulator.
# ----------------------------------------------------------------------------
def _linear_kernel(*refs, activation, has_bias, k_steps):
    if has_bias:
        x_ref, w_ref, b_ref, o_ref, acc_ref = refs
    else:
        x_ref, w_ref, o_ref, acc_ref = refs
        b_ref = None

    @pl.when(pl.program_id(2) == 0)
    def _():
        acc_ref[...] = jnp.zeros_like(acc_ref)

    acc_ref[...] += jnp.dot(x_ref[...].astype(jnp.bfloat16),
                            w_ref[...].astype(jnp.bfloat16),
                            preferred_element_type=jnp.float32)

    @pl.when(pl.program_id(2) == k_steps - 1)
    def _():
        acc = acc_ref[...]
        if b_ref is not None:
            acc = acc + b_ref[...]
        if activation == "gelu":
            # GPT-style tanh GELU, f32 VPU/EUP math.
            c = 0.7978845608028654  # sqrt(2/pi)
            acc = 0.5 * acc * (1.0 + jnp.tanh(c * acc * (1.0 + 0.044715 * acc * acc)))
        o_ref[...] = acc.astype(o_ref.dtype)


def linear(x, w, b=None, activation=None, out_dtype=jnp.bfloat16):
    M, K = x.shape
    K2, N = w.shape
    assert K2 == K

    tm = _tile(M, 512, (256, 128, 16, 8))
    tn = _tile(N, 512, (256, 128))
    tk = _tile(K, 512, (256, 128))
    k_steps = K // tk
    grid = (M // tm, N // tn, k_steps)

    in_specs = [pl.BlockSpec((tm, tk), lambda i, j, k: (i, k)),
                pl.BlockSpec((tk, tn), lambda i, j, k: (k, j))]
    args = [x, w]

    has_bias = b is not None
    if has_bias:
        in_specs.append(pl.BlockSpec((1, tn), lambda i, j, k: (0, j)))
        args.append(b.reshape(1, N).astype(jnp.float32))

    kernel = functools.partial(_linear_kernel, activation=activation,
                               has_bias=has_bias, k_steps=k_steps)
    return pl.pallas_call(
        kernel,
        out_shape=jax.ShapeDtypeStruct((M, N), out_dtype),
        grid=grid,
        in_specs=in_specs,
        out_specs=pl.BlockSpec((tm, tn), lambda i, j, k: (i, j)),
        scratch_shapes=[pltpu.VMEM((tm, tn), jnp.float32)],
        compiler_params=pltpu.CompilerParams(
            dimension_semantics=("parallel", "parallel", "arbitrary")),
    )(*args)


# ----------------------------------------------------------------------------
# Fused linear + residual-add + LayerNorm (out-proj / ff2 epilogue).
#   o = LayerNorm(residual + x @ w + b) * gamma + beta   (emitted bf16)
# tn == N == E so the last-k step sees complete rows for the LN reduction.
# ----------------------------------------------------------------------------
def _linear_add_ln_kernel(x_ref, w_ref, b_ref, r_ref, g_ref, be_ref,
                          o_ref, acc_ref, *, k_steps, eps):
    @pl.when(pl.program_id(1) == 0)
    def _():
        acc_ref[...] = jnp.zeros_like(acc_ref)

    acc_ref[...] += jnp.dot(x_ref[...].astype(jnp.bfloat16),
                            w_ref[...].astype(jnp.bfloat16),
                            preferred_element_type=jnp.float32)

    @pl.when(pl.program_id(1) == k_steps - 1)
    def _():
        y = acc_ref[...] + b_ref[...] + r_ref[...].astype(jnp.float32)
        mu = jnp.mean(y, axis=-1, keepdims=True)
        yc = y - mu
        var = jnp.mean(yc * yc, axis=-1, keepdims=True)
        inv = jax.lax.rsqrt(var + eps)
        o_ref[...] = (yc * inv * g_ref[...] + be_ref[...]).astype(o_ref.dtype)


def linear_add_ln(x, w, b, residual, gamma, beta, eps=1e-5):
    M, K = x.shape
    K2, N = w.shape
    assert K2 == K and residual.shape == (M, N)

    tm = _tile(M, 512, (256, 128, 16, 8))
    tk = _tile(K, 512, (256, 128))
    k_steps = K // tk
    grid = (M // tm, k_steps)

    kernel = functools.partial(_linear_add_ln_kernel, k_steps=k_steps, eps=eps)
    return pl.pallas_call(
        kernel,
        out_shape=jax.ShapeDtypeStruct((M, N), jnp.bfloat16),
        grid=grid,
        in_specs=[
            pl.BlockSpec((tm, tk), lambda i, k: (i, k)),
            pl.BlockSpec((tk, N), lambda i, k: (k, 0)),
            pl.BlockSpec((1, N), lambda i, k: (0, 0)),
            pl.BlockSpec((tm, N), lambda i, k: (i, 0)),
            pl.BlockSpec((1, N), lambda i, k: (0, 0)),
            pl.BlockSpec((1, N), lambda i, k: (0, 0)),
        ],
        out_specs=pl.BlockSpec((tm, N), lambda i, k: (i, 0)),
        scratch_shapes=[pltpu.VMEM((tm, N), jnp.float32)],
        compiler_params=pltpu.CompilerParams(
            dimension_semantics=("parallel", "arbitrary")),
    )(x, w, b.reshape(1, N).astype(jnp.float32), residual,
      gamma.reshape(1, N).astype(jnp.float32),
      beta.reshape(1, N).astype(jnp.float32))


# ----------------------------------------------------------------------------
# Multi-head attention, q-row tiled; heads folded into the lane axis (no HBM
# transposes); causal + key-padding mask built in-kernel per q tile.
# ----------------------------------------------------------------------------
def _attention_kernel(qkv_ref, kbias_ref, o_ref, *, n_heads, scale, tq):
    S = qkv_ref.shape[1]
    E = o_ref.shape[2]
    Dh = E // n_heads

    q_start = pl.multiple_of(pl.program_id(1) * tq, tq)

    # Additive mask for this q tile: causal (cols <= rows) + key-padding bias;
    # built once per grid step on the VPU, reused by every head.
    rows = jax.lax.broadcasted_iota(jnp.int32, (tq, S), 0) + q_start
    cols = jax.lax.broadcasted_iota(jnp.int32, (tq, S), 1)
    bias = jnp.where(cols <= rows, 0.0, -1e9).astype(jnp.float32)
    bias = bias + kbias_ref[0]                                   # [tq,S] + [1,S]

    outs = []
    for h in range(n_heads):
        # Per-head lane slices straight from VMEM (static lane offsets).
        q_h = qkv_ref[0, pl.ds(q_start, tq), h * Dh:(h + 1) * Dh]       # [tq,Dh] bf16
        k_h = qkv_ref[0, :, E + h * Dh:E + (h + 1) * Dh]                # [S, Dh] bf16
        v_h = qkv_ref[0, :, 2 * E + h * Dh:2 * E + (h + 1) * Dh]        # [S, Dh] bf16

        q_h = q_h * scale                                   # fold 1/sqrt(Dh) into q
        s = jax.lax.dot_general(
            q_h, k_h, dimension_numbers=(((1,), (1,)), ((), ())),
            preferred_element_type=jnp.float32)             # [tq, S] f32
        s = s + bias

        m = jnp.max(s, axis=-1, keepdims=True)
        p = jnp.exp(s - m)
        denom = jnp.sum(p, axis=-1, keepdims=True)

        o_h = jnp.dot(p.astype(jnp.bfloat16), v_h,
                      preferred_element_type=jnp.float32)    # [tq, Dh] f32
        # normalize AFTER the PV matmul: Dh-wide multiply instead of S-wide
        o_h = o_h * pl.reciprocal(denom, approx=True)
        outs.append(o_h)

    # single lane-dense [tq, E] store (no Dh-wide masked partial stores)
    o_ref[0, :, :] = jnp.concatenate(outs, axis=-1).astype(o_ref.dtype)


def multihead_attention(qkv, key_bias, n_heads, scale):
    B, S, E3 = qkv.shape
    E = E3 // 3
    tq = _tile(S, 256, (128, 16, 8))
    grid = (B, S // tq)
    return pl.pallas_call(
        functools.partial(_attention_kernel, n_heads=n_heads, scale=scale, tq=tq),
        out_shape=jax.ShapeDtypeStruct((B, S, E), jnp.bfloat16),
        grid=grid,
        in_specs=[
            # block index ignores qi -> fetched once per batch, reused across q tiles
            pl.BlockSpec((1, S, E3), lambda b, qi: (b, 0, 0)),
            pl.BlockSpec((1, 1, S), lambda b, qi: (b, 0, 0)),
        ],
        out_specs=pl.BlockSpec((1, tq, E), lambda b, qi: (b, qi, 0)),
        compiler_params=pltpu.CompilerParams(
            dimension_semantics=("parallel", "parallel")),
    )(qkv, key_bias)


# ----------------------------------------------------------------------------
# Parameters (deterministic init; shapes follow the module __init__)
# ----------------------------------------------------------------------------
def init_params(key, n_layers, n_embeddings, n_pos_embeddings, embeddings_size,
                padding_idx):
    E = embeddings_size
    keys = jax.random.split(key, 2 + 4 * n_layers)
    it = iter(keys)

    def normal(k, shape, dtype=jnp.float32):
        return (0.02 * jax.random.normal(k, shape)).astype(dtype)

    emb = normal(next(it), (n_embeddings, E))
    emb = emb.at[padding_idx].set(0.0)               # nn.Embedding padding_idx
    pos_emb = normal(next(it), (n_pos_embeddings + 1, E))
    pos_emb = pos_emb.at[0].set(0.0)                 # pos padding_idx = 0

    # tied pre_softmax weight: bf16, pre-transposed [E, V], built once at init
    emb_lm = emb.T.astype(jnp.bfloat16)

    layers = []
    for _ in range(n_layers):
        layers.append(dict(
            qkv_w=normal(next(it), (E, 3 * E), jnp.bfloat16),
            qkv_b=jnp.zeros((3 * E,), jnp.float32),
            out_w=normal(next(it), (E, E), jnp.bfloat16),
            out_b=jnp.zeros((E,), jnp.float32),
            ln1_g=jnp.ones((E,), jnp.float32),
            ln1_b=jnp.zeros((E,), jnp.float32),
            ff1_w=normal(next(it), (E, 4 * E), jnp.bfloat16),
            ff1_b=jnp.zeros((4 * E,), jnp.float32),
            ff2_w=normal(next(it), (4 * E, E), jnp.bfloat16),
            ff2_b=jnp.zeros((E,), jnp.float32),
            ln2_g=jnp.ones((E,), jnp.float32),
            ln2_b=jnp.zeros((E,), jnp.float32),
        ))
    return dict(emb=emb, emb_lm=emb_lm, pos_emb=pos_emb, layers=layers)


# ----------------------------------------------------------------------------
# Forward: decode(x, []) == pre_softmax(TransformerModule(x)[0])
# ----------------------------------------------------------------------------
def transformer_forward(params, x, *, padding_idx, n_heads):
    B, S = x.shape
    emb = params["emb"]
    V, E = emb.shape
    assert E % n_heads == 0
    Dh = E // n_heads

    pad_mask = (x == padding_idx)                                    # [B, S]
    # NOTE: positions can exceed the pos table for very long inputs; JAX gather
    # clamps silently (PyTorch would error). Fine for S <= n_pos_embeddings.
    positions = jnp.cumsum((~pad_mask).astype(jnp.int32), axis=-1)
    positions = jnp.where(pad_mask, 0, positions)

    # glue: embedding gathers + scale (XLA); activations flow bf16 afterwards
    h = emb[x] * math.sqrt(E) + params["pos_emb"][positions]         # [B,S,E] f32
    h2 = h.reshape(B * S, E).astype(jnp.bfloat16)

    # tiny [B,1,S] additive key-padding bias; causal part is built in-kernel.
    key_bias = jnp.where(pad_mask, -1e9, 0.0).astype(jnp.float32).reshape(B, 1, S)

    scale = 1.0 / math.sqrt(Dh)

    for layer in params["layers"]:
        # --- self attention ---
        qkv = linear(h2, layer["qkv_w"], layer["qkv_b"])             # [B*S,3E] bf16
        attn = multihead_attention(qkv.reshape(B, S, 3 * E),
                                   key_bias, n_heads, scale)         # [B,S,E] bf16
        h2 = linear_add_ln(attn.reshape(B * S, E), layer["out_w"], layer["out_b"],
                           h2, layer["ln1_g"], layer["ln1_b"])       # fused proj+res+LN
        # --- feed forward ---
        f = linear(h2, layer["ff1_w"], layer["ff1_b"], activation="gelu")
        h2 = linear_add_ln(f, layer["ff2_w"], layer["ff2_b"],
                           h2, layer["ln2_g"], layer["ln2_b"])

    # pre_softmax: tied-weight projection (bias=False), pre-transposed bf16 table
    logits = linear(h2, params["emb_lm"], b=None, out_dtype=jnp.float32)  # [B*S,V]
    return logits.reshape(B, S, V)


# ----------------------------------------------------------------------------
if __name__ == "__main__":
    # Small config consistent with the module's __init__ signature.
    n_layers = 2
    n_embeddings = 64          # vocab size V
    n_pos_embeddings = 16
    embeddings_size = 32       # E
    padding_idx = 0
    n_heads = 4
    B, S = 2, 8

    key = jax.random.PRNGKey(0)
    pkey, xkey = jax.random.split(key)

    params = init_params(pkey, n_layers, n_embeddings, n_pos_embeddings,
                         embeddings_size, padding_idx)

    # deterministic example tokens in [1, V); last 2 positions of row 1 padded
    x = jax.random.randint(xkey, (B, S), 1, n_embeddings, dtype=jnp.int32)
    x = x.at[1, -2:].set(padding_idx)

    fwd = jax.jit(functools.partial(transformer_forward,
                                    padding_idx=padding_idx, n_heads=n_heads))
    logits = fwd(params, x)
    jax.block_until_ready(logits)

    assert logits.shape == (B, S, n_embeddings), logits.shape
    assert bool(jnp.all(jnp.isfinite(logits)))
    print("KERNEL_OK")
</pallas_src>

<mosaic_0001>
module attributes {stable_mosaic.version = 11 : i64} {
  func.func @_linear_kernel(%arg0: i32, %arg1: i32, %arg2: i32, %arg3: memref<16x32xbf16, #tpu.memory_space<vmem>>, %arg4: memref<32x96xbf16, #tpu.memory_space<vmem>>, %arg5: memref<1x96xf32, #tpu.memory_space<vmem>>, %arg6: memref<16x96xbf16, #tpu.memory_space<vmem>>, %arg7: memref<16x96xf32, #tpu.memory_space<vmem>>) attributes {dimension_semantics = [#tpu.dimension_semantics<parallel>, #tpu.dimension_semantics<parallel>, #tpu.dimension_semantics<arbitrary>], iteration_bounds = array<i64: 1, 1, 1>, scalar_prefetch = 0 : i64, scratch_operands = 1 : i64, tpu.core_type = #tpu.core_type<tc>, window_params = [{transform_indices = @transform_0, window_bounds = array<i64: 16, 32>}, {transform_indices = @transform_1, window_bounds = array<i64: 32, 96>}, {transform_indices = @transform_2, window_bounds = array<i64: 1, 96>}, {transform_indices = @transform_3, window_bounds = array<i64: 16, 96>}]} {
    %c0_i32 = arith.constant 0 : i32
    %0 = arith.cmpi eq, %arg2, %c0_i32 : i32
    %1 = arith.extui %0 : i1 to i32
    %c0_i32_0 = arith.constant 0 : i32
    %2 = arith.cmpi ne, %1, %c0_i32_0 : i32
    scf.if %2 {
      %cst_10 = arith.constant 0.000000e+00 : f32
      %12 = vector.broadcast %cst_10 : f32 to vector<16x96xf32>
      %c0_11 = arith.constant 0 : index
      %c0_12 = arith.constant 0 : index
      %13 = vector.load %arg7[%c0_11, %c0_12] : memref<16x96xf32, #tpu.memory_space<vmem>>, vector<16x96xf32>
      tpu.vector_store %arg7[%c0_11, %c0_12], %12 {strides = array<i32>} : memref<16x96xf32, #tpu.memory_space<vmem>>, vector<16x96xf32>,
    } else {
    }
    %c0 = arith.constant 0 : index
    %c0_1 = arith.constant 0 : index
    %3 = vector.load %arg7[%c0, %c0_1] : memref<16x96xf32, #tpu.memory_space<vmem>>, vector<16x96xf32>
    %c0_2 = arith.constant 0 : index
    %c0_3 = arith.constant 0 : index
    %4 = vector.load %arg3[%c0_2, %c0_3] : memref<16x32xbf16, #tpu.memory_space<vmem>>, vector<16x32xbf16>
    %c0_4 = arith.constant 0 : index
    %c0_5 = arith.constant 0 : index
    %5 = vector.load %arg4[%c0_4, %c0_5] : memref<32x96xbf16, #tpu.memory_space<vmem>>, vector<32x96xbf16>
    %cst = arith.constant dense<0.000000e+00> : vector<16x96xf32>
    %6 = tpu.matmul %4, %5, %cst {dimension_numbers = #tpu.dot_dimension_numbers<[1], [0], [0], [1], [0, 0, 1, 1], [], []>} : vector<16x32xbf16>, vector<32x96xbf16>, vector<16x96xf32> -> vector<16x96xf32>
    %7 = arith.addf %3, %6 : vector<16x96xf32>
    %c0_6 = arith.constant 0 : index
    %c0_7 = arith.constant 0 : index
    %8 = vector.load %arg7[%c0_6, %c0_7] : memref<16x96xf32, #tpu.memory_space<vmem>>, vector<16x96xf32>
    tpu.vector_store %arg7[%c0_6, %c0_7], %7 {strides = array<i32>} : memref<16x96xf32, #tpu.memory_space<vmem>>, vector<16x96xf32>,
    %c0_i32_8 = arith.constant 0 : i32
    %9 = arith.cmpi eq, %arg2, %c0_i32_8 : i32
    %10 = arith.extui %9 : i1 to i32
    %c0_i32_9 = arith.constant 0 : i32
    %11 = arith.cmpi ne, %10, %c0_i32_9 : i32
    scf.if %11 {
      %c0_10 = arith.constant 0 : index
      %c0_11 = arith.constant 0 : index
      %12 = vector.load %arg7[%c0_10, %c0_11] : memref<16x96xf32, #tpu.memory_space<vmem>>, vector<16x96xf32>
      %c0_12 = arith.constant 0 : index
      %c0_13 = arith.constant 0 : index
      %13 = vector.load %arg5[%c0_12, %c0_13] : memref<1x96xf32, #tpu.memory_space<vmem>>, vector<1x96xf32>
      %14 = vector.broadcast %13 : vector<1x96xf32> to vector<16x96xf32>
      %15 = arith.addf %12, %14 : vector<16x96xf32>
      %16 = arith.truncf %15 : vector<16x96xf32> to vector<16x96xbf16>
      %c0_14 = arith.constant 0 : index
      %c0_15 = arith.constant 0 : index
      %17 = vector.load %arg6[%c0_14, %c0_15] : memref<16x96xbf16, #tpu.memory_space<vmem>>, vector<16x96xbf16>
      tpu.vector_store %arg6[%c0_14, %c0_15], %16 {strides = array<i32>} : memref<16x96xbf16, #tpu.memory_space<vmem>>, vector<16x96xbf16>,
    } else {
    }
    return
  }
  func.func @transform_0(%arg0: i32, %arg1: i32, %arg2: i32) -> (i32, i32) {
    %c0_i32 = arith.constant 0 : i32
    return %arg0, %arg2 : i32, i32
  }
  func.func @transform_1(%arg0: i32, %arg1: i32, %arg2: i32) -> (i32, i32) {
    %c0_i32 = arith.constant 0 : i32
    return %arg2, %arg1 : i32, i32
  }
  func.func @transform_2(%arg0: i32, %arg1: i32, %arg2: i32) -> (i32, i32) {
    %c0_i32 = arith.constant 0 : i32
    %c0_i32_0 = arith.constant 0 : i32
    return %c0_i32, %arg1 : i32, i32
  }
  func.func @transform_3(%arg0: i32, %arg1: i32, %arg2: i32) -> (i32, i32) {
    %c0_i32 = arith.constant 0 : i32
    return %arg0, %arg1 : i32, i32
  }
}

module attributes {stable_mosaic.version = 11 : i64} {
  func.func @_linear_kernel(%arg0: i32, %arg1: i32, %arg2: i32, %arg3: memref<16x32xbf16, #tpu.memory_space<vmem>>, %arg4: memref<32x128xbf16, #tpu.memory_space<vmem>>, %arg5: memref<1x128xf32, #tpu.memory_space<vmem>>, %arg6: memref<16x128xbf16, #tpu.memory_space<vmem>>, %arg7: memref<16x128xf32, #tpu.memory_space<vmem>>) attributes {dimension_semantics = [#tpu.dimension_semantics<parallel>, #tpu.dimension_semantics<parallel>, #tpu.dimension_semantics<arbitrary>], iteration_bounds = array<i64: 1, 1, 1>, scalar_prefetch = 0 : i64, scratch_operands = 1 : i64, tpu.core_type = #tpu.core_type<tc>, window_params = [{transform_indices = @transform_0, window_bounds = array<i64: 16, 32>}, {transform_indices = @transform_1, window_bounds = array<i64: 32, 128>}, {transform_indices = @transform_2, window_bounds = array<i64: 1, 128>}, {transform_indices = @transform_3, window_bounds = array<i64: 16, 128>}]} {
    %c0_i32 = arith.constant 0 : i32
    %0 = arith.cmpi eq, %arg2, %c0_i32 : i32
    %1 = arith.extui %0 : i1 to i32
    %c0_i32_0 = arith.constant 0 : i32
    %2 = arith.cmpi ne, %1, %c0_i32_0 : i32
    scf.if %2 {
      %cst_10 = arith.constant 0.000000e+00 : f32
      %12 = vector.broadcast %cst_10 : f32 to vector<16x128xf32>
      %c0_11 = arith.constant 0 : index
      %c0_12 = arith.constant 0 : index
      %13 = vector.load %arg7[%c0_11, %c0_12] : memref<16x128xf32, #tpu.memory_space<vmem>>, vector<16x128xf32>
      tpu.vector_store %arg7[%c0_11, %c0_12], %12 {strides = array<i32>} : memref<16x128xf32, #tpu.memory_space<vmem>>, vector<16x128xf32>,
    } else {
    }
    %c0 = arith.constant 0 : index
    %c0_1 = arith.constant 0 : index
    %3 = vector.load %arg7[%c0, %c0_1] : memref<16x128xf32, #tpu.memory_space<vmem>>, vector<16x128xf32>
    %c0_2 = arith.constant 0 : index
    %c0_3 = arith.constant 0 : index
    %4 = vector.load %arg3[%c0_2, %c0_3] : memref<16x32xbf16, #tpu.memory_space<vmem>>, vector<16x32xbf16>
    %c0_4 = arith.constant 0 : index
    %c0_5 = arith.constant 0 : index
    %5 = vector.load %arg4[%c0_4, %c0_5] : memref<32x128xbf16, #tpu.memory_space<vmem>>, vector<32x128xbf16>
    %cst = arith.constant dense<0.000000e+00> : vector<16x128xf32>
    %6 = tpu.matmul %4, %5, %cst {dimension_numbers = #tpu.dot_dimension_numbers<[1], [0], [0], [1], [0, 0, 1, 1], [], []>} : vector<16x32xbf16>, vector<32x128xbf16>, vector<16x128xf32> -> vector<16x128xf32>
    %7 = arith.addf %3, %6 : vector<16x128xf32>
    %c0_6 = arith.constant 0 : index
    %c0_7 = arith.constant 0 : index
    %8 = vector.load %arg7[%c0_6, %c0_7] : memref<16x128xf32, #tpu.memory_space<vmem>>, vector<16x128xf32>
    tpu.vector_store %arg7[%c0_6, %c0_7], %7 {strides = array<i32>} : memref<16x128xf32, #tpu.memory_space<vmem>>, vector<16x128xf32>,
    %c0_i32_8 = arith.constant 0 : i32
    %9 = arith.cmpi eq, %arg2, %c0_i32_8 : i32
    %10 = arith.extui %9 : i1 to i32
    %c0_i32_9 = arith.constant 0 : i32
    %11 = arith.cmpi ne, %10, %c0_i32_9 : i32
    scf.if %11 {
      %c0_10 = arith.constant 0 : index
      %c0_11 = arith.constant 0 : index
      %12 = vector.load %arg7[%c0_10, %c0_11] : memref<16x128xf32, #tpu.memory_space<vmem>>, vector<16x128xf32>
      %c0_12 = arith.constant 0 : index
      %c0_13 = arith.constant 0 : index
      %13 = vector.load %arg5[%c0_12, %c0_13] : memref<1x128xf32, #tpu.memory_space<vmem>>, vector<1x128xf32>
      %14 = vector.broadcast %13 : vector<1x128xf32> to vector<16x128xf32>
      %15 = arith.addf %12, %14 : vector<16x128xf32>
      %cst_14 = arith.constant 5.000000e-01 : f32
      %16 = vector.broadcast %cst_14 : f32 to vector<16x128xf32>
      %17 = arith.mulf %16, %15 : vector<16x128xf32>
      %cst_15 = arith.constant 0.797884583 : f32
      %18 = vector.broadcast %cst_15 : f32 to vector<16x128xf32>
      %19 = arith.mulf %18, %15 : vector<16x128xf32>
      %cst_16 = arith.constant 4.471500e-02 : f32
      %20 = vector.broadcast %cst_16 : f32 to vector<16x128xf32>
      %21 = arith.mulf %20, %15 : vector<16x128xf32>
      %22 = arith.mulf %21, %15 : vector<16x128xf32>
      %cst_17 = arith.constant 1.000000e+00 : f32
      %23 = vector.broadcast %cst_17 : f32 to vector<16x128xf32>
      %24 = arith.addf %23, %22 : vector<16x128xf32>
      %25 = arith.mulf %19, %24 : vector<16x128xf32>
      %26 = math.tanh %25 : vector<16x128xf32>
      %cst_18 = arith.constant 1.000000e+00 : f32
      %27 = vector.broadcast %cst_18 : f32 to vector<16x128xf32>
      %28 = arith.addf %27, %26 : vector<16x128xf32>
      %29 = arith.mulf %17, %28 : vector<16x128xf32>
      %30 = arith.truncf %29 : vector<16x128xf32> to vector<16x128xbf16>
      %c0_19 = arith.constant 0 : index
      %c0_20 = arith.constant 0 : index
      %31 = vector.load %arg6[%c0_19, %c0_20] : memref<16x128xbf16, #tpu.memory_space<vmem>>, vector<16x128xbf16>
      tpu.vector_store %arg6[%c0_19, %c0_20], %30 {strides = array<i32>} : memref<16x128xbf16, #tpu.memory_space<vmem>>, vector<16x128xbf16>,
    } else {
    }
    return
  }
  func.func @transform_0(%arg0: i32, %arg1: i32, %arg2: i32) -> (i32, i32) {
    %c0_i32 = arith.constant 0 : i32
    return %arg0, %arg2 : i32, i32
  }
  func.func @transform_1(%arg0: i32, %arg1: i32, %arg2: i32) -> (i32, i32) {
    %c0_i32 = arith.constant 0 : i32
    return %arg2, %arg1 : i32, i32
  }
  func.func @transform_2(%arg0: i32, %arg1: i32, %arg2: i32) -> (i32, i32) {
    %c0_i32 = arith.constant 0 : i32
    %c0_i32_0 = arith.constant 0 : i32
    return %c0_i32, %arg1 : i32, i32
  }
  func.func @transform_3(%arg0: i32, %arg1: i32, %arg2: i32) -> (i32, i32) {
    %c0_i32 = arith.constant 0 : i32
    return %arg0, %arg1 : i32, i32
  }
}

module attributes {stable_mosaic.version = 11 : i64} {
  func.func @_linear_add_ln_kernel(%arg0: i32, %arg1: i32, %arg2: memref<16x32xbf16, #tpu.memory_space<vmem>>, %arg3: memref<32x32xbf16, #tpu.memory_space<vmem>>, %arg4: memref<1x32xf32, #tpu.memory_space<vmem>>, %arg5: memref<16x32xbf16, #tpu.memory_space<vmem>>, %arg6: memref<1x32xf32, #tpu.memory_space<vmem>>, %arg7: memref<1x32xf32, #tpu.memory_space<vmem>>, %arg8: memref<16x32xbf16, #tpu.memory_space<vmem>>, %arg9: memref<16x32xf32, #tpu.memory_space<vmem>>) attributes {dimension_semantics = [#tpu.dimension_semantics<parallel>, #tpu.dimension_semantics<arbitrary>], iteration_bounds = array<i64: 1, 1>, scalar_prefetch = 0 : i64, scratch_operands = 1 : i64, tpu.core_type = #tpu.core_type<tc>, window_params = [{transform_indices = @transform_0, window_bounds = array<i64: 16, 32>}, {transform_indices = @transform_1, window_bounds = array<i64: 32, 32>}, {pipeline_mode = #tpu.pipeline_mode<synchronous>, transform_indices = @transform_2, window_bounds = array<i64: 1, 32>}, {transform_indices = @transform_3, window_bounds = array<i64: 16, 32>}, {pipeline_mode = #tpu.pipeline_mode<synchronous>, transform_indices = @transform_4, window_bounds = array<i64: 1, 32>}, {pipeline_mode = #tpu.pipeline_mode<synchronous>, transform_indices = @transform_5, window_bounds = array<i64: 1, 32>}, {transform_indices = @transform_6, window_bounds = array<i64: 16, 32>}]} {
    %c0_i32 = arith.constant 0 : i32
    %0 = arith.cmpi eq, %arg1, %c0_i32 : i32
    %1 = arith.extui %0 : i1 to i32
    %c0_i32_0 = arith.constant 0 : i32
    %2 = arith.cmpi ne, %1, %c0_i32_0 : i32
    scf.if %2 {
      %cst_10 = arith.constant 0.000000e+00 : f32
      %12 = vector.broadcast %cst_10 : f32 to vector<16x32xf32>
      %c0_11 = arith.constant 0 : index
      %c0_12 = arith.constant 0 : index
      %13 = vector.load %arg9[%c0_11, %c0_12] : memref<16x32xf32, #tpu.memory_space<vmem>>, vector<16x32xf32>
      tpu.vector_store %arg9[%c0_11, %c0_12], %12 {strides = array<i32>} : memref<16x32xf32, #tpu.memory_space<vmem>>, vector<16x32xf32>,
    } else {
    }
    %c0 = arith.constant 0 : index
    %c0_1 = arith.constant 0 : index
    %3 = vector.load %arg9[%c0, %c0_1] : memref<16x32xf32, #tpu.memory_space<vmem>>, vector<16x32xf32>
    %c0_2 = arith.constant 0 : index
    %c0_3 = arith.constant 0 : index
    %4 = vector.load %arg2[%c0_2, %c0_3] : memref<16x32xbf16, #tpu.memory_space<vmem>>, vector<16x32xbf16>
    %c0_4 = arith.constant 0 : index
    %c0_5 = arith.constant 0 : index
    %5 = vector.load %arg3[%c0_4, %c0_5] : memref<32x32xbf16, #tpu.memory_space<vmem>>, vector<32x32xbf16>
    %cst = arith.constant dense<0.000000e+00> : vector<16x32xf32>
    %6 = tpu.matmul %4, %5, %cst {dimension_numbers = #tpu.dot_dimension_numbers<[1], [0], [0], [1], [0, 0, 1, 1], [], []>} : vector<16x32xbf16>, vector<32x32xbf16>, vector<16x32xf32> -> vector<16x32xf32>
    %7 = arith.addf %3, %6 : vector<16x32xf32>
    %c0_6 = arith.constant 0 : index
    %c0_7 = arith.constant 0 : index
    %8 = vector.load %arg9[%c0_6, %c0_7] : memref<16x32xf32, #tpu.memory_space<vmem>>, vector<16x32xf32>
    tpu.vector_store %arg9[%c0_6, %c0_7], %7 {strides = array<i32>} : memref<16x32xf32, #tpu.memory_space<vmem>>, vector<16x32xf32>,
    %c0_i32_8 = arith.constant 0 : i32
    %9 = arith.cmpi eq, %arg1, %c0_i32_8 : i32
    %10 = arith.extui %9 : i1 to i32
    %c0_i32_9 = arith.constant 0 : i32
    %11 = arith.cmpi ne, %10, %c0_i32_9 : i32
    scf.if %11 {
      %c0_10 = arith.constant 0 : index
      %c0_11 = arith.constant 0 : index
      %12 = vector.load %arg9[%c0_10, %c0_11] : memref<16x32xf32, #tpu.memory_space<vmem>>, vector<16x32xf32>
      %c0_12 = arith.constant 0 : index
      %c0_13 = arith.constant 0 : index
      %13 = vector.load %arg4[%c0_12, %c0_13] : memref<1x32xf32, #tpu.memory_space<vmem>>, vector<1x32xf32>
      %14 = vector.broadcast %13 : vector<1x32xf32> to vector<16x32xf32>
      %15 = arith.addf %12, %14 : vector<16x32xf32>
      %c0_14 = arith.constant 0 : index
      %c0_15 = arith.constant 0 : index
      %16 = vector.load %arg5[%c0_14, %c0_15] : memref<16x32xbf16, #tpu.memory_space<vmem>>, vector<16x32xbf16>
      %17 = arith.extf %16 : vector<16x32xbf16> to vector<16x32xf32>
      %18 = arith.addf %15, %17 : vector<16x32xf32>
      %cst_16 = arith.constant dense<0.000000e+00> : vector<16xf32>
      %19 = vector.multi_reduction <add>, %18, %cst_16 [1] : vector<16x32xf32> to vector<16xf32>
      %20 = vector.shape_cast %19 : vector<16xf32> to vector<16x1xf32>
      %cst_17 = arith.constant 3.200000e+01 : f32
      %21 = vector.broadcast %cst_17 : f32 to vector<16x1xf32>
      %22 = arith.divf %20, %21 : vector<16x1xf32>
      %23 = vector.broadcast %22 : vector<16x1xf32> to vector<16x32xf32>
      %24 = arith.subf %18, %23 : vector<16x32xf32>
      %25 = arith.mulf %24, %24 : vector<16x32xf32>
      %cst_18 = arith.constant dense<0.000000e+00> : vector<16xf32>
      %26 = vector.multi_reduction <add>, %25, %cst_18 [1] : vector<16x32xf32> to vector<16xf32>
      %27 = vector.shape_cast %26 : vector<16xf32> to vector<16x1xf32>
      %cst_19 = arith.constant 3.200000e+01 : f32
      %28 = vector.broadcast %cst_19 : f32 to vector<16x1xf32>
      %29 = arith.divf %27, %28 : vector<16x1xf32>
      %cst_20 = arith.constant 9.99999974E-6 : f32
      %30 = vector.broadcast %cst_20 : f32 to vector<16x1xf32>
      %31 = arith.addf %29, %30 : vector<16x1xf32>
      %32 = math.rsqrt %31 : vector<16x1xf32>
      %33 = vector.broadcast %32 : vector<16x1xf32> to vector<16x32xf32>
      %34 = arith.mulf %24, %33 : vector<16x32xf32>
      %c0_21 = arith.constant 0 : index
      %c0_22 = arith.constant 0 : index
      %35 = vector.load %arg6[%c0_21, %c0_22] : memref<1x32xf32, #tpu.memory_space<vmem>>, vector<1x32xf32>
      %36 = vector.broadcast %35 : vector<1x32xf32> to vector<16x32xf32>
      %37 = arith.mulf %34, %36 : vector<16x32xf32>
      %c0_23 = arith.constant 0 : index
      %c0_24 = arith.constant 0 : index
      %38 = vector.load %arg7[%c0_23, %c0_24] : memref<1x32xf32, #tpu.memory_space<vmem>>, vector<1x32xf32>
      %39 = vector.broadcast %38 : vector<1x32xf32> to vector<16x32xf32>
      %40 = arith.addf %37, %39 : vector<16x32xf32>
      %41 = arith.truncf %40 : vector<16x32xf32> to vector<16x32xbf16>
      %c0_25 = arith.constant 0 : index
      %c0_26 = arith.constant 0 : index
      %42 = vector.load %arg8[%c0_25, %c0_26] : memref<16x32xbf16, #tpu.memory_space<vmem>>, vector<16x32xbf16>
      tpu.vector_store %arg8[%c0_25, %c0_26], %41 {strides = array<i32>} : memref<16x32xbf16, #tpu.memory_space<vmem>>, vector<16x32xbf16>,
    } else {
    }
    return
  }
  func.func @transform_0(%arg0: i32, %arg1: i32) -> (i32, i32) {
    %c0_i32 = arith.constant 0 : i32
    return %arg0, %arg1 : i32, i32
  }
  func.func @transform_1(%arg0: i32, %arg1: i32) -> (i32, i32) {
    %c0_i32 = arith.constant 0 : i32
    %c0_i32_0 = arith.constant 0 : i32
    return %arg1, %c0_i32 : i32, i32
  }
  func.func @transform_2(%arg0: i32, %arg1: i32) -> (i32, i32) {
    %c0_i32 = arith.constant 0 : i32
    %c0_i32_0 = arith.constant 0 : i32
    %c0_i32_1 = arith.constant 0 : i32
    return %c0_i32, %c0_i32_0 : i32, i32
  }
  func.func @transform_3(%arg0: i32, %arg1: i32) -> (i32, i32) {
    %c0_i32 = arith.constant 0 : i32
    %c0_i32_0 = arith.constant 0 : i32
    return %arg0, %c0_i32 : i32, i32
  }
  func.func @transform_4(%arg0: i32, %arg1: i32) -> (i32, i32) {
    %c0_i32 = arith.constant 0 : i32
    %c0_i32_0 = arith.constant 0 : i32
    %c0_i32_1 = arith.constant 0 : i32
    return %c0_i32, %c0_i32_0 : i32, i32
  }
  func.func @transform_5(%arg0: i32, %arg1: i32) -> (i32, i32) {
    %c0_i32 = arith.constant 0 : i32
    %c0_i32_0 = arith.constant 0 : i32
    %c0_i32_1 = arith.constant 0 : i32
    return %c0_i32, %c0_i32_0 : i32, i32
  }
  func.func @transform_6(%arg0: i32, %arg1: i32) -> (i32, i32) {
    %c0_i32 = arith.constant 0 : i32
    %c0_i32_0 = arith.constant 0 : i32
    return %arg0, %c0_i32 : i32, i32
  }
}

module attributes {stable_mosaic.version = 11 : i64} {
  func.func @_attention_kernel(%arg0: i32, %arg1: i32, %arg2: memref<1x8x96xbf16, #tpu.memory_space<vmem>>, %arg3: memref<1x1x8xf32, #tpu.memory_space<vmem>>, %arg4: memref<1x8x32xbf16, #tpu.memory_space<vmem>>) attributes {dimension_semantics = [#tpu.dimension_semantics<parallel>, #tpu.dimension_semantics<parallel>], iteration_bounds = array<i64: 2, 1>, scalar_prefetch = 0 : i64, scratch_operands = 0 : i64, tpu.core_type = #tpu.core_type<tc>, window_params = [{transform_indices = @transform_0, window_bounds = array<i64: 1, 8, 96>}, {transform_indices = @transform_1, window_bounds = array<i64: 1, 1, 8>}, {transform_indices = @transform_2, window_bounds = array<i64: 1, 8, 32>}]} {
    %c8_i32 = arith.constant 8 : i32
    %0 = arith.muli %arg1, %c8_i32 : i32
    %1 = tpu.assume_multiple %0, 8 : i32
    %2 = tpu.iota {dimensions = array<i32: 0>} : vector<8x8xi32>
    %3 = vector.broadcast %1 : i32 to vector<8x8xi32>
    %4 = arith.addi %2, %3 : vector<8x8xi32>
    %5 = tpu.iota {dimensions = array<i32: 1>} : vector<8x8xi32>
    %6 = arith.cmpi sle, %5, %4 : vector<8x8xi32>
    %cst = arith.constant 0.000000e+00 : f32
    %cst_0 = arith.constant -1.000000e+09 : f32
    %7 = vector.broadcast %cst : f32 to vector<8x8xf32>
    %8 = vector.broadcast %cst_0 : f32 to vector<8x8xf32>
    %9 = arith.select %6, %7, %8 : vector<8x8xi1>, vector<8x8xf32>
    %c0 = arith.constant 0 : index
    %c0_1 = arith.constant 0 : index
    %c0_2 = arith.constant 0 : index
    %10 = vector.load %arg3[%c0, %c0_1, %c0_2] : memref<1x1x8xf32, #tpu.memory_space<vmem>>, vector<1x1x8xf32>
    %11 = vector.shape_cast %10 : vector<1x1x8xf32> to vector<1x8xf32>
    %12 = vector.broadcast %11 : vector<1x8xf32> to vector<8x8xf32>
    %13 = arith.addf %9, %12 : vector<8x8xf32>
    %c0_3 = arith.constant 0 : index
    %14 = arith.index_cast %1 : i32 to index
    %c0_4 = arith.constant 0 : index
    %15 = vector.load %arg2[%c0_3, %14, %c0_4] : memref<1x8x96xbf16, #tpu.memory_space<vmem>>, vector<1x8x8xbf16>
    %16 = vector.shape_cast %15 : vector<1x8x8xbf16> to vector<8x8xbf16>
    %c0_5 = arith.constant 0 : index
    %c0_6 = arith.constant 0 : index
    %c32 = arith.constant 32 : index
    %17 = vector.load %arg2[%c0_5, %c0_6, %c32] : memref<1x8x96xbf16, #tpu.memory_space<vmem>>, vector<1x8x8xbf16>
    %18 = vector.shape_cast %17 : vector<1x8x8xbf16> to vector<8x8xbf16>
    %c0_7 = arith.constant 0 : index
    %c0_8 = arith.constant 0 : index
    %c64 = arith.constant 64 : index
    %19 = vector.load %arg2[%c0_7, %c0_8, %c64] : memref<1x8x96xbf16, #tpu.memory_space<vmem>>, vector<1x8x8xbf16>
    %20 = vector.shape_cast %19 : vector<1x8x8xbf16> to vector<8x8xbf16>
    %cst_9 = arith.constant 3.535160e-01 : bf16
    %21 = vector.broadcast %cst_9 : bf16 to vector<8x8xbf16>
    %22 = arith.mulf %16, %21 : vector<8x8xbf16>
    %cst_10 = arith.constant dense<0.000000e+00> : vector<8x8xf32>
    %23 = tpu.matmul %22, %18, %cst_10 {dimension_numbers = #tpu.dot_dimension_numbers<[1], [1], [0], [0], [0, 0, 1, 0], [], []>} : vector<8x8xbf16>, vector<8x8xbf16>, vector<8x8xf32> -> vector<8x8xf32>
    %24 = arith.addf %23, %13 : vector<8x8xf32>
    %cst_11 = arith.constant dense<0xFF800000> : vector<8xf32>
    %25 = vector.multi_reduction <maximumf>, %24, %cst_11 [1] : vector<8x8xf32> to vector<8xf32>
    %26 = vector.shape_cast %25 : vector<8xf32> to vector<8x1xf32>
    %27 = vector.broadcast %26 : vector<8x1xf32> to vector<8x8xf32>
    %28 = arith.subf %24, %27 : vector<8x8xf32>
    %29 = math.exp %28 : vector<8x8xf32>
    %cst_12 = arith.constant dense<0.000000e+00> : vector<8xf32>
    %30 = vector.multi_reduction <add>, %29, %cst_12 [1] : vector<8x8xf32> to vector<8xf32>
    %31 = vector.shape_cast %30 : vector<8xf32> to vector<8x1xf32>
    %32 = arith.truncf %29 : vector<8x8xf32> to vector<8x8xbf16>
    %cst_13 = arith.constant dense<0.000000e+00> : vector<8x8xf32>
    %33 = tpu.matmul %32, %20, %cst_13 {dimension_numbers = #tpu.dot_dimension_numbers<[1], [0], [0], [1], [0, 0, 1, 1], [], []>} : vector<8x8xbf16>, vector<8x8xbf16>, vector<8x8xf32> -> vector<8x8xf32>
    %34 = tpu.reciprocal %31 {approx = true} : vector<8x1xf32> -> vector<8x1xf32>
    %35 = vector.broadcast %34 : vector<8x1xf32> to vector<8x8xf32>
    %36 = arith.mulf %33, %35 : vector<8x8xf32>
    %c0_14 = arith.constant 0 : index
    %37 = arith.index_cast %1 : i32 to index
    %c8 = arith.constant 8 : index
    %38 = vector.load %arg2[%c0_14, %37, %c8] : memref<1x8x96xbf16, #tpu.memory_space<vmem>>, vector<1x8x8xbf16>
    %39 = vector.shape_cast %38 : vector<1x8x8xbf16> to vector<8x8xbf16>
    %c0_15 = arith.constant 0 : index
    %c0_16 = arith.constant 0 : index
    %c40 = arith.constant 40 : index
    %40 = vector.load %arg2[%c0_15, %c0_16, %c40] : memref<1x8x96xbf16, #tpu.memory_space<vmem>>, vector<1x8x8xbf16>
    %41 = vector.shape_cast %40 : vector<1x8x8xbf16> to vector<8x8xbf16>
    %c0_17 = arith.constant 0 : index
    %c0_18 = arith.constant 0 : index
    %c72 = arith.constant 72 : index
    %42 = vector.load %arg2[%c0_17, %c0_18, %c72] : memref<1x8x96xbf16, #tpu.memory_space<vmem>>, vector<1x8x8xbf16>
    %43 = vector.shape_cast %42 : vector<1x8x8xbf16> to vector<8x8xbf16>
    %cst_19 = arith.constant 3.535160e-01 : bf16
    %44 = vector.broadcast %cst_19 : bf16 to vector<8x8xbf16>
    %45 = arith.mulf %39, %44 : vector<8x8xbf16>
    %cst_20 = arith.constant dense<0.000000e+00> : vector<8x8xf32>
    %46 = tpu.matmul %45, %41, %cst_20 {dimension_numbers = #tpu.dot_dimension_numbers<[1], [1], [0], [0], [0, 0, 1, 0], [], []>} : vector<8x8xbf16>, vector<8x8xbf16>, vector<8x8xf32> -> vector<8x8xf32>
    %47 = arith.addf %46, %13 : vector<8x8xf32>
    %cst_21 = arith.constant dense<0xFF800000> : vector<8xf32>
    %48 = vector.multi_reduction <maximumf>, %47, %cst_21 [1] : vector<8x8xf32> to vector<8xf32>
    %49 = vector.shape_cast %48 : vector<8xf32> to vector<8x1xf32>
    %50 = vector.broadcast %49 : vector<8x1xf32> to vector<8x8xf32>
    %51 = arith.subf %47, %50 : vector<8x8xf32>
    %52 = math.exp %51 : vector<8x8xf32>
    %cst_22 = arith.constant dense<0.000000e+00> : vector<8xf32>
    %53 = vector.multi_reduction <add>, %52, %cst_22 [1] : vector<8x8xf32> to vector<8xf32>
    %54 = vector.shape_cast %53 : vector<8xf32> to vector<8x1xf32>
    %55 = arith.truncf %52 : vector<8x8xf32> to vector<8x8xbf16>
    %cst_23 = arith.constant dense<0.000000e+00> : vector<8x8xf32>
    %56 = tpu.matmul %55, %43, %cst_23 {dimension_numbers = #tpu.dot_dimension_numbers<[1], [0], [0], [1], [0, 0, 1, 1], [], []>} : vector<8x8xbf16>, vector<8x8xbf16>, vector<8x8xf32> -> vector<8x8xf32>
    %57 = tpu.reciprocal %54 {approx = true} : vector<8x1xf32> -> vector<8x1xf32>
    %58 = vector.broadcast %57 : vector<8x1xf32> to vector<8x8xf32>
    %59 = arith.mulf %56, %58 : vector<8x8xf32>
    %c0_24 = arith.constant 0 : index
    %60 = arith.index_cast %1 : i32 to index
    %c16 = arith.constant 16 : index
    %61 = vector.load %arg2[%c0_24, %60, %c16] : memref<1x8x96xbf16, #tpu.memory_space<vmem>>, vector<1x8x8xbf16>
    %62 = vector.shape_cast %61 : vector<1x8x8xbf16> to vector<8x8xbf16>
    %c0_25 = arith.constant 0 : index
    %c0_26 = arith.constant 0 : index
    %c48 = arith.constant 48 : index
    %63 = vector.load %arg2[%c0_25, %c0_26, %c48] : memref<1x8x96xbf16, #tpu.memory_space<vmem>>, vector<1x8x8xbf16>
    %64 = vector.shape_cast %63 : vector<1x8x8xbf16> to vector<8x8xbf16>
    %c0_27 = arith.constant 0 : index
    %c0_28 = arith.constant 0 : index
    %c80 = arith.constant 80 : index
    %65 = vector.load %arg2[%c0_27, %c0_28, %c80] : memref<1x8x96xbf16, #tpu.memory_space<vmem>>, vector<1x8x8xbf16>
    %66 = vector.shape_cast %65 : vector<1x8x8xbf16> to vector<8x8xbf16>
    %cst_29 = arith.constant 3.535160e-01 : bf16
    %67 = vector.broadcast %cst_29 : bf16 to vector<8x8xbf16>
    %68 = arith.mulf %62, %67 : vector<8x8xbf16>
    %cst_30 = arith.constant dense<0.000000e+00> : vector<8x8xf32>
    %69 = tpu.matmul %68, %64, %cst_30 {dimension_numbers = #tpu.dot_dimension_numbers<[1], [1], [0], [0], [0, 0, 1, 0], [], []>} : vector<8x8xbf16>, vector<8x8xbf16>, vector<8x8xf32> -> vector<8x8xf32>
    %70 = arith.addf %69, %13 : vector<8x8xf32>
    %cst_31 = arith.constant dense<0xFF800000> : vector<8xf32>
    %71 = vector.multi_reduction <maximumf>, %70, %cst_31 [1] : vector<8x8xf32> to vector<8xf32>
    %72 = vector.shape_cast %71 : vector<8xf32> to vector<8x1xf32>
    %73 = vector.broadcast %72 : vector<8x1xf32> to vector<8x8xf32>
    %74 = arith.subf %70, %73 : vector<8x8xf32>
    %75 = math.exp %74 : vector<8x8xf32>
    %cst_32 = arith.constant dense<0.000000e+00> : vector<8xf32>
    %76 = vector.multi_reduction <add>, %75, %cst_32 [1] : vector<8x8xf32> to vector<8xf32>
    %77 = vector.shape_cast %76 : vector<8xf32> to vector<8x1xf32>
    %78 = arith.truncf %75 : vector<8x8xf32> to vector<8x8xbf16>
    %cst_33 = arith.constant dense<0.000000e+00> : vector<8x8xf32>
    %79 = tpu.matmul %78, %66, %cst_33 {dimension_numbers = #tpu.dot_dimension_numbers<[1], [0], [0], [1], [0, 0, 1, 1], [], []>} : vector<8x8xbf16>, vector<8x8xbf16>, vector<8x8xf32> -> vector<8x8xf32>
    %80 = tpu.reciprocal %77 {approx = true} : vector<8x1xf32> -> vector<8x1xf32>
    %81 = vector.broadcast %80 : vector<8x1xf32> to vector<8x8xf32>
    %82 = arith.mulf %79, %81 : vector<8x8xf32>
    %c0_34 = arith.constant 0 : index
    %83 = arith.index_cast %1 : i32 to index
    %c24 = arith.constant 24 : index
    %84 = vector.load %arg2[%c0_34, %83, %c24] : memref<1x8x96xbf16, #tpu.memory_space<vmem>>, vector<1x8x8xbf16>
    %85 = vector.shape_cast %84 : vector<1x8x8xbf16> to vector<8x8xbf16>
    %c0_35 = arith.constant 0 : index
    %c0_36 = arith.constant 0 : index
    %c56 = arith.constant 56 : index
    %86 = vector.load %arg2[%c0_35, %c0_36, %c56] : memref<1x8x96xbf16, #tpu.memory_space<vmem>>, vector<1x8x8xbf16>
    %87 = vector.shape_cast %86 : vector<1x8x8xbf16> to vector<8x8xbf16>
    %c0_37 = arith.constant 0 : index
    %c0_38 = arith.constant 0 : index
    %c88 = arith.constant 88 : index
    %88 = vector.load %arg2[%c0_37, %c0_38, %c88] : memref<1x8x96xbf16, #tpu.memory_space<vmem>>, vector<1x8x8xbf16>
    %89 = vector.shape_cast %88 : vector<1x8x8xbf16> to vector<8x8xbf16>
    %cst_39 = arith.constant 3.535160e-01 : bf16
    %90 = vector.broadcast %cst_39 : bf16 to vector<8x8xbf16>
    %91 = arith.mulf %85, %90 : vector<8x8xbf16>
    %cst_40 = arith.constant dense<0.000000e+00> : vector<8x8xf32>
    %92 = tpu.matmul %91, %87, %cst_40 {dimension_numbers = #tpu.dot_dimension_numbers<[1], [1], [0], [0], [0, 0, 1, 0], [], []>} : vector<8x8xbf16>, vector<8x8xbf16>, vector<8x8xf32> -> vector<8x8xf32>
    %93 = arith.addf %92, %13 : vector<8x8xf32>
    %cst_41 = arith.constant dense<0xFF800000> : vector<8xf32>
    %94 = vector.multi_reduction <maximumf>, %93, %cst_41 [1] : vector<8x8xf32> to vector<8xf32>
    %95 = vector.shape_cast %94 : vector<8xf32> to vector<8x1xf32>
    %96 = vector.broadcast %95 : vector<8x1xf32> to vector<8x8xf32>
    %97 = arith.subf %93, %96 : vector<8x8xf32>
    %98 = math.exp %97 : vector<8x8xf32>
    %cst_42 = arith.constant dense<0.000000e+00> : vector<8xf32>
    %99 = vector.multi_reduction <add>, %98, %cst_42 [1] : vector<8x8xf32> to vector<8xf32>
    %100 = vector.shape_cast %99 : vector<8xf32> to vector<8x1xf32>
    %101 = arith.truncf %98 : vector<8x8xf32> to vector<8x8xbf16>
    %cst_43 = arith.constant dense<0.000000e+00> : vector<8x8xf32>
    %102 = tpu.matmul %101, %89, %cst_43 {dimension_numbers = #tpu.dot_dimension_numbers<[1], [0], [0], [1], [0, 0, 1, 1], [], []>} : vector<8x8xbf16>, vector<8x8xbf16>, vector<8x8xf32> -> vector<8x8xf32>
    %103 = tpu.reciprocal %100 {approx = true} : vector<8x1xf32> -> vector<8x1xf32>
    %104 = vector.broadcast %103 : vector<8x1xf32> to vector<8x8xf32>
    %105 = arith.mulf %102, %104 : vector<8x8xf32>
    %106 = tpu.concatenate %36, %59, %82, %105 in 1 : vector<8x8xf32>, vector<8x8xf32>, vector<8x8xf32>, vector<8x8xf32> -> vector<8x32xf32>
    %107 = arith.truncf %106 : vector<8x32xf32> to vector<8x32xbf16>
    %c0_44 = arith.constant 0 : index
    %c0_45 = arith.constant 0 : index
    %c0_46 = arith.constant 0 : index
    %108 = vector.load %arg4[%c0_44, %c0_45, %c0_46] : memref<1x8x32xbf16, #tpu.memory_space<vmem>>, vector<1x8x32xbf16>
    %109 = vector.shape_cast %108 : vector<1x8x32xbf16> to vector<8x32xbf16>
    %110 = vector.shape_cast %107 : vector<8x32xbf16> to vector<1x8x32xbf16>
    tpu.vector_store %arg4[%c0_44, %c0_45, %c0_46], %110 {strides = array<i32>} : memref<1x8x32xbf16, #tpu.memory_space<vmem>>, vector<1x8x32xbf16>,
    return
  }
  func.func @transform_0(%arg0: i32, %arg1: i32) -> (i32, i32, i32) {
    %c0_i32 = arith.constant 0 : i32
    %c0_i32_0 = arith.constant 0 : i32
    %c0_i32_1 = arith.constant 0 : i32
    return %arg0, %c0_i32, %c0_i32_0 : i32, i32, i32
  }
  func.func @transform_1(%arg0: i32, %arg1: i32) -> (i32, i32, i32) {
    %c0_i32 = arith.constant 0 : i32
    %c0_i32_0 = arith.constant 0 : i32
    %c0_i32_1 = arith.constant 0 : i32
    return %arg0, %c0_i32, %c0_i32_0 : i32, i32, i32
  }
  func.func @transform_2(%arg0: i32, %arg1: i32) -> (i32, i32, i32) {
    %c0_i32 = arith.constant 0 : i32
    %c0_i32_0 = arith.constant 0 : i32
    return %arg0, %arg1, %c0_i32 : i32, i32, i32
  }
}

module attributes {stable_mosaic.version = 11 : i64} {
  func.func @_linear_kernel(%arg0: i32, %arg1: i32, %arg2: i32, %arg3: memref<16x32xbf16, #tpu.memory_space<vmem>>, %arg4: memref<32x64xbf16, #tpu.memory_space<vmem>>, %arg5: memref<16x64xf32, #tpu.memory_space<vmem>>, %arg6: memref<16x64xf32, #tpu.memory_space<vmem>>) attributes {dimension_semantics = [#tpu.dimension_semantics<parallel>, #tpu.dimension_semantics<parallel>, #tpu.dimension_semantics<arbitrary>], iteration_bounds = array<i64: 1, 1, 1>, scalar_prefetch = 0 : i64, scratch_operands = 1 : i64, tpu.core_type = #tpu.core_type<tc>, window_params = [{transform_indices = @transform_0, window_bounds = array<i64: 16, 32>}, {transform_indices = @transform_1, window_bounds = array<i64: 32, 64>}, {transform_indices = @transform_2, window_bounds = array<i64: 16, 64>}]} {
    %c0_i32 = arith.constant 0 : i32
    %0 = arith.cmpi eq, %arg2, %c0_i32 : i32
    %1 = arith.extui %0 : i1 to i32
    %c0_i32_0 = arith.constant 0 : i32
    %2 = arith.cmpi ne, %1, %c0_i32_0 : i32
    scf.if %2 {
      %cst_10 = arith.constant 0.000000e+00 : f32
      %12 = vector.broadcast %cst_10 : f32 to vector<16x64xf32>
      %c0_11 = arith.constant 0 : index
      %c0_12 = arith.constant 0 : index
      %13 = vector.load %arg6[%c0_11, %c0_12] : memref<16x64xf32, #tpu.memory_space<vmem>>, vector<16x64xf32>
      tpu.vector_store %arg6[%c0_11, %c0_12], %12 {strides = array<i32>} : memref<16x64xf32, #tpu.memory_space<vmem>>, vector<16x64xf32>,
    } else {
    }
    %c0 = arith.constant 0 : index
    %c0_1 = arith.constant 0 : index
    %3 = vector.load %arg6[%c0, %c0_1] : memref<16x64xf32, #tpu.memory_space<vmem>>, vector<16x64xf32>
    %c0_2 = arith.constant 0 : index
    %c0_3 = arith.constant 0 : index
    %4 = vector.load %arg3[%c0_2, %c0_3] : memref<16x32xbf16, #tpu.memory_space<vmem>>, vector<16x32xbf16>
    %c0_4 = arith.constant 0 : index
    %c0_5 = arith.constant 0 : index
    %5 = vector.load %arg4[%c0_4, %c0_5] : memref<32x64xbf16, #tpu.memory_space<vmem>>, vector<32x64xbf16>
    %cst = arith.constant dense<0.000000e+00> : vector<16x64xf32>
    %6 = tpu.matmul %4, %5, %cst {dimension_numbers = #tpu.dot_dimension_numbers<[1], [0], [0], [1], [0, 0, 1, 1], [], []>} : vector<16x32xbf16>, vector<32x64xbf16>, vector<16x64xf32> -> vector<16x64xf32>
    %7 = arith.addf %3, %6 : vector<16x64xf32>
    %c0_6 = arith.constant 0 : index
    %c0_7 = arith.constant 0 : index
    %8 = vector.load %arg6[%c0_6, %c0_7] : memref<16x64xf32, #tpu.memory_space<vmem>>, vector<16x64xf32>
    tpu.vector_store %arg6[%c0_6, %c0_7], %7 {strides = array<i32>} : memref<16x64xf32, #tpu.memory_space<vmem>>, vector<16x64xf32>,
    %c0_i32_8 = arith.constant 0 : i32
    %9 = arith.cmpi eq, %arg2, %c0_i32_8 : i32
    %10 = arith.extui %9 : i1 to i32
    %c0_i32_9 = arith.constant 0 : i32
    %11 = arith.cmpi ne, %10, %c0_i32_9 : i32
    scf.if %11 {
      %c0_10 = arith.constant 0 : index
      %c0_11 = arith.constant 0 : index
      %12 = vector.load %arg6[%c0_10, %c0_11] : memref<16x64xf32, #tpu.memory_space<vmem>>, vector<16x64xf32>
      %c0_12 = arith.constant 0 : index
      %c0_13 = arith.constant 0 : index
      %13 = vector.load %arg5[%c0_12, %c0_13] : memref<16x64xf32, #tpu.memory_space<vmem>>, vector<16x64xf32>
      tpu.vector_store %arg5[%c0_12, %c0_13], %12 {strides = array<i32>} : memref<16x64xf32, #tpu.memory_space<vmem>>, vector<16x64xf32>,
    } else {
    }
    return
  }
  func.func @transform_0(%arg0: i32, %arg1: i32, %arg2: i32) -> (i32, i32) {
    %c0_i32 = arith.constant 0 : i32
    return %arg0, %arg2 : i32, i32
  }
  func.func @transform_1(%arg0: i32, %arg1: i32, %arg2: i32) -> (i32, i32) {
    %c0_i32 = arith.constant 0 : i32
    return %arg2, %arg1 : i32, i32
  }
  func.func @transform_2(%arg0: i32, %arg1: i32, %arg2: i32) -> (i32, i32) {
    %c0_i32 = arith.constant 0 : i32
    return %arg0, %arg1 : i32, i32
  }
}

module attributes {stable_mosaic.version = 11 : i64} {
  func.func @_linear_add_ln_kernel(%arg0: i32, %arg1: i32, %arg2: memref<16x128xbf16, #tpu.memory_space<vmem>>, %arg3: memref<128x32xbf16, #tpu.memory_space<vmem>>, %arg4: memref<1x32xf32, #tpu.memory_space<vmem>>, %arg5: memref<16x32xbf16, #tpu.memory_space<vmem>>, %arg6: memref<1x32xf32, #tpu.memory_space<vmem>>, %arg7: memref<1x32xf32, #tpu.memory_space<vmem>>, %arg8: memref<16x32xbf16, #tpu.memory_space<vmem>>, %arg9: memref<16x32xf32, #tpu.memory_space<vmem>>) attributes {dimension_semantics = [#tpu.dimension_semantics<parallel>, #tpu.dimension_semantics<arbitrary>], iteration_bounds = array<i64: 1, 1>, scalar_prefetch = 0 : i64, scratch_operands = 1 : i64, tpu.core_type = #tpu.core_type<tc>, window_params = [{transform_indices = @transform_0, window_bounds = array<i64: 16, 128>}, {transform_indices = @transform_1, window_bounds = array<i64: 128, 32>}, {pipeline_mode = #tpu.pipeline_mode<synchronous>, transform_indices = @transform_2, window_bounds = array<i64: 1, 32>}, {transform_indices = @transform_3, window_bounds = array<i64: 16, 32>}, {pipeline_mode = #tpu.pipeline_mode<synchronous>, transform_indices = @transform_4, window_bounds = array<i64: 1, 32>}, {pipeline_mode = #tpu.pipeline_mode<synchronous>, transform_indices = @transform_5, window_bounds = array<i64: 1, 32>}, {transform_indices = @transform_6, window_bounds = array<i64: 16, 32>}]} {
    %c0_i32 = arith.constant 0 : i32
    %0 = arith.cmpi eq, %arg1, %c0_i32 : i32
    %1 = arith.extui %0 : i1 to i32
    %c0_i32_0 = arith.constant 0 : i32
    %2 = arith.cmpi ne, %1, %c0_i32_0 : i32
    scf.if %2 {
      %cst_10 = arith.constant 0.000000e+00 : f32
      %12 = vector.broadcast %cst_10 : f32 to vector<16x32xf32>
      %c0_11 = arith.constant 0 : index
      %c0_12 = arith.constant 0 : index
      %13 = vector.load %arg9[%c0_11, %c0_12] : memref<16x32xf32, #tpu.memory_space<vmem>>, vector<16x32xf32>
      tpu.vector_store %arg9[%c0_11, %c0_12], %12 {strides = array<i32>} : memref<16x32xf32, #tpu.memory_space<vmem>>, vector<16x32xf32>,
    } else {
    }
    %c0 = arith.constant 0 : index
    %c0_1 = arith.constant 0 : index
    %3 = vector.load %arg9[%c0, %c0_1] : memref<16x32xf32, #tpu.memory_space<vmem>>, vector<16x32xf32>
    %c0_2 = arith.constant 0 : index
    %c0_3 = arith.constant 0 : index
    %4 = vector.load %arg2[%c0_2, %c0_3] : memref<16x128xbf16, #tpu.memory_space<vmem>>, vector<16x128xbf16>
    %c0_4 = arith.constant 0 : index
    %c0_5 = arith.constant 0 : index
    %5 = vector.load %arg3[%c0_4, %c0_5] : memref<128x32xbf16, #tpu.memory_space<vmem>>, vector<128x32xbf16>
    %cst = arith.constant dense<0.000000e+00> : vector<16x32xf32>
    %6 = tpu.matmul %4, %5, %cst {dimension_numbers = #tpu.dot_dimension_numbers<[1], [0], [0], [1], [0, 0, 1, 1], [], []>} : vector<16x128xbf16>, vector<128x32xbf16>, vector<16x32xf32> -> vector<16x32xf32>
    %7 = arith.addf %3, %6 : vector<16x32xf32>
    %c0_6 = arith.constant 0 : index
    %c0_7 = arith.constant 0 : index
    %8 = vector.load %arg9[%c0_6, %c0_7] : memref<16x32xf32, #tpu.memory_space<vmem>>, vector<16x32xf32>
    tpu.vector_store %arg9[%c0_6, %c0_7], %7 {strides = array<i32>} : memref<16x32xf32, #tpu.memory_space<vmem>>, vector<16x32xf32>,
    %c0_i32_8 = arith.constant 0 : i32
    %9 = arith.cmpi eq, %arg1, %c0_i32_8 : i32
    %10 = arith.extui %9 : i1 to i32
    %c0_i32_9 = arith.constant 0 : i32
    %11 = arith.cmpi ne, %10, %c0_i32_9 : i32
    scf.if %11 {
      %c0_10 = arith.constant 0 : index
      %c0_11 = arith.constant 0 : index
      %12 = vector.load %arg9[%c0_10, %c0_11] : memref<16x32xf32, #tpu.memory_space<vmem>>, vector<16x32xf32>
      %c0_12 = arith.constant 0 : index
      %c0_13 = arith.constant 0 : index
      %13 = vector.load %arg4[%c0_12, %c0_13] : memref<1x32xf32, #tpu.memory_space<vmem>>, vector<1x32xf32>
      %14 = vector.broadcast %13 : vector<1x32xf32> to vector<16x32xf32>
      %15 = arith.addf %12, %14 : vector<16x32xf32>
      %c0_14 = arith.constant 0 : index
      %c0_15 = arith.constant 0 : index
      %16 = vector.load %arg5[%c0_14, %c0_15] : memref<16x32xbf16, #tpu.memory_space<vmem>>, vector<16x32xbf16>
      %17 = arith.extf %16 : vector<16x32xbf16> to vector<16x32xf32>
      %18 = arith.addf %15, %17 : vector<16x32xf32>
      %cst_16 = arith.constant dense<0.000000e+00> : vector<16xf32>
      %19 = vector.multi_reduction <add>, %18, %cst_16 [1] : vector<16x32xf32> to vector<16xf32>
      %20 = vector.shape_cast %19 : vector<16xf32> to vector<16x1xf32>
      %cst_17 = arith.constant 3.200000e+01 : f32
      %21 = vector.broadcast %cst_17 : f32 to vector<16x1xf32>
      %22 = arith.divf %20, %21 : vector<16x1xf32>
      %23 = vector.broadcast %22 : vector<16x1xf32> to vector<16x32xf32>
      %24 = arith.subf %18, %23 : vector<16x32xf32>
      %25 = arith.mulf %24, %24 : vector<16x32xf32>
      %cst_18 = arith.constant dense<0.000000e+00> : vector<16xf32>
      %26 = vector.multi_reduction <add>, %25, %cst_18 [1] : vector<16x32xf32> to vector<16xf32>
      %27 = vector.shape_cast %26 : vector<16xf32> to vector<16x1xf32>
      %cst_19 = arith.constant 3.200000e+01 : f32
      %28 = vector.broadcast %cst_19 : f32 to vector<16x1xf32>
      %29 = arith.divf %27, %28 : vector<16x1xf32>
      %cst_20 = arith.constant 9.99999974E-6 : f32
      %30 = vector.broadcast %cst_20 : f32 to vector<16x1xf32>
      %31 = arith.addf %29, %30 : vector<16x1xf32>
      %32 = math.rsqrt %31 : vector<16x1xf32>
      %33 = vector.broadcast %32 : vector<16x1xf32> to vector<16x32xf32>
      %34 = arith.mulf %24, %33 : vector<16x32xf32>
      %c0_21 = arith.constant 0 : index
      %c0_22 = arith.constant 0 : index
      %35 = vector.load %arg6[%c0_21, %c0_22] : memref<1x32xf32, #tpu.memory_space<vmem>>, vector<1x32xf32>
      %36 = vector.broadcast %35 : vector<1x32xf32> to vector<16x32xf32>
      %37 = arith.mulf %34, %36 : vector<16x32xf32>
      %c0_23 = arith.constant 0 : index
      %c0_24 = arith.constant 0 : index
      %38 = vector.load %arg7[%c0_23, %c0_24] : memref<1x32xf32, #tpu.memory_space<vmem>>, vector<1x32xf32>
      %39 = vector.broadcast %38 : vector<1x32xf32> to vector<16x32xf32>
      %40 = arith.addf %37, %39 : vector<16x32xf32>
      %41 = arith.truncf %40 : vector<16x32xf32> to vector<16x32xbf16>
      %c0_25 = arith.constant 0 : index
      %c0_26 = arith.constant 0 : index
      %42 = vector.load %arg8[%c0_25, %c0_26] : memref<16x32xbf16, #tpu.memory_space<vmem>>, vector<16x32xbf16>
      tpu.vector_store %arg8[%c0_25, %c0_26], %41 {strides = array<i32>} : memref<16x32xbf16, #tpu.memory_space<vmem>>, vector<16x32xbf16>,
    } else {
    }
    return
  }
  func.func @transform_0(%arg0: i32, %arg1: i32) -> (i32, i32) {
    %c0_i32 = arith.constant 0 : i32
    return %arg0, %arg1 : i32, i32
  }
  func.func @transform_1(%arg0: i32, %arg1: i32) -> (i32, i32) {
    %c0_i32 = arith.constant 0 : i32
    %c0_i32_0 = arith.constant 0 : i32
    return %arg1, %c0_i32 : i32, i32
  }
  func.func @transform_2(%arg0: i32, %arg1: i32) -> (i32, i32) {
    %c0_i32 = arith.constant 0 : i32
    %c0_i32_0 = arith.constant 0 : i32
    %c0_i32_1 = arith.constant 0 : i32
    return %c0_i32, %c0_i32_0 : i32, i32
  }
  func.func @transform_3(%arg0: i32, %arg1: i32) -> (i32, i32) {
    %c0_i32 = arith.constant 0 : i32
    %c0_i32_0 = arith.constant 0 : i32
    return %arg0, %c0_i32 : i32, i32
  }
  func.func @transform_4(%arg0: i32, %arg1: i32) -> (i32, i32) {
    %c0_i32 = arith.constant 0 : i32
    %c0_i32_0 = arith.constant 0 : i32
    %c0_i32_1 = arith.constant 0 : i32
    return %c0_i32, %c0_i32_0 : i32, i32
  }
  func.func @transform_5(%arg0: i32, %arg1: i32) -> (i32, i32) {
    %c0_i32 = arith.constant 0 : i32
    %c0_i32_0 = arith.constant 0 : i32
    %c0_i32_1 = arith.constant 0 : i32
    return %c0_i32, %c0_i32_0 : i32, i32
  }
  func.func @transform_6(%arg0: i32, %arg1: i32) -> (i32, i32) {
    %c0_i32 = arith.constant 0 : i32
    %c0_i32_0 = arith.constant 0 : i32
    return %arg0, %c0_i32 : i32, i32
  }
}

</mosaic_0001>

<llo_original>
// kernel: transformer_forward.11
$region0: #{transformer_forward.11}
  #allocation0 [shape = 'u32[]', space=smem, size = 0x4, offset = 0x4, fixed_abs, tag = 'smem constant byte address 0x4 - core index']
  #allocation1 [shape = 'u32[144,128]{1,0:T(1,128)}', space=vmem, size = 0x12000, scoped, tag = 'internal scratch']
  #allocation2 [shape = 'f32[16,96]{1,0:T(8,128)}', space=vmem, size = 0x2000, scoped, tag = 'scratch operand']
  %s0 = inlined_call_operand.vmem [shape: bf16[16,32], index: 0, kind: input, shape index: {}]
  %s1 = inlined_call_operand.vmem [shape: bf16[32,96], index: 1, kind: input, shape index: {}]
  %s2 = inlined_call_operand.vmem [shape: f32[1,96], index: 2, kind: input, shape index: {}]
  %s3 = inlined_call_operand.vmem [shape: bf16[16,96], index: 3, kind: output, shape index: {}]
  %s4 = sld [smem:[#allocation0]]
  $region30: #{transformer_forward.11} parent=0
    _
  %s6 = ssub.s32 1, %s4
  %s7 = scalar_select 0, %s6, %s4
  // Predicated region
  $region2: #{transformer_forward.11} parent=0 // pred_check
    _
  $region3: #{transformer_forward.11} parent=0 // pred_check_branch
    %9 = sbr.rel (0) target = $region5
  $region4: #{transformer_forward.11} parent=0 // pred_region
    _
  $region5: #{transformer_forward.11} parent=0 // pred_fallthru
    _
  // Predicated region
  $region6: #{transformer_forward.11} parent=0 // pred_check
    _
  $region7: #{transformer_forward.11} parent=0 // pred_check_branch
    %11 = sbr.rel (0) target = $region9
  $region8: #{transformer_forward.11} parent=0 // pred_region
    _
  $region9: #{transformer_forward.11} parent=0 // pred_fallthru
    _
  // Predicated region
  $region10: #{transformer_forward.11} parent=0 // pred_check
    _
  $region11: #{transformer_forward.11} parent=0 // pred_check_branch
    %13 = sbr.rel (0) target = $region13
  $region12: #{transformer_forward.11} parent=0 // pred_region
    _
  $region13: #{transformer_forward.11} parent=0 // pred_fallthru
    _
  %p15 = scmp.eq.s32.totalorder 0, 0
  // Predicated region
  $region14: #{transformer_forward.11} parent=0 // pred_check
    %p16 = pneg %p15
  $region15: #{transformer_forward.11} parent=0 // pred_check_branch
    %18 = sbr.rel (%p16) target = $region17
  $region16: #{transformer_forward.11} parent=0 // pred_region
    %vm19 = vcmask 785408
    %20 = vst.msk [vmem:[#allocation2] sm:$0xff] %vm19, 0.0
    %21 = vst.msk [vmem:[#allocation2 + $0x8] sm:$0xff] %vm19, 0.0
  $region17: #{transformer_forward.11} parent=0 // pred_fallthru
    _
  %v22 = vld [vmem:[#allocation2] sm:$0xff]
  %v23 = vld [vmem:[#allocation2 + $0x8] sm:$0xff]
  %v24 = vld [vmem:[%s0] sm:$0xf]
  %v25 = vld [vmem:[%s0 + $0x4] sm:$0xf]
  %v26 = vld [vmem:[%s1] sm:$0xf]
  %v27 = vld [vmem:[%s1 + $0x4] sm:$0xf]
  %v28 = vld [vmem:[%s1 + $0x8] sm:$0xf]
  %v29 = vld [vmem:[%s1 + $0xc] sm:$0xf]
  %v32 = vunpack.c.l.b16 %v24
  %v33 = vunpack.c.l.b16 %v25
  %v34 = vpack.c.b16 %v33, %v32
  %v39 = vunpack.c.l.b16 %v26
  %v40 = vunpack.c.l.b16 %v27
  %v41 = vunpack.c.l.b16 %v28
  %v42 = vunpack.c.l.b16 %v29
  %v43 = vpack.c.b16 %v40, %v39
  %v44 = vpack.c.b16 %v42, %v41
  %vm47 = vcmask 261120
  %v49 = vsel %vm47, %v34, 0
  %51 = vmatprep.subr.bf16.mxu0 0
  %52 = vmatpush1.bf16.msra.mxu0 %v43
  %53 = vmatprep.subr.bf16.mxu0 0
  %54 = vmatpush1.bf16.msra.mxu0 %v44
  %55 = vmatprep.subr.bf16.mxu0 0
  %56 = vmatpush1.bf16.msra.mxu0 0
  %57 = vmatprep.subr.bf16.mxu0 0
  %58 = vmatpush1.bf16.msra.mxu0 0
  %59 = vmatprep.subr.bf16.mxu0 0
  %60 = vmatpush1.bf16.msra.mxu0 0
  %61 = vmatprep.subr.bf16.mxu0 0
  %62 = vmatpush1.bf16.msra.mxu0 0
  %63 = vmatprep.subr.bf16.mxu0 0
  %64 = vmatpush1.bf16.msra.mxu0 0
  %65 = vmatprep.subr.bf16.mxu0 0
  %66 = vmatpush1.bf16.msra.mxu0 0
  %67 = vmatprep.subr.bf16.mxu0 0
  %68 = vmatpush1.bf16.msra.mxu0 0
  %69 = vmatprep.subr.bf16.mxu0 0
  %70 = vmatpush1.bf16.msra.mxu0 0
  %71 = vmatprep.subr.bf16.mxu0 0
  %72 = vmatpush1.bf16.msra.mxu0 0
  %73 = vmatprep.subr.bf16.mxu0 0
  %74 = vmatpush1.bf16.msra.mxu0 0
  %75 = vmatprep.subr.bf16.mxu0 0
  %76 = vmatpush1.bf16.msra.mxu0 0
  %77 = vmatprep.subr.bf16.mxu0 0
  %78 = vmatpush1.bf16.msra.mxu0 0
  %79 = vmatprep.subr.bf16.mxu0 0
  %80 = vmatpush1.bf16.msra.mxu0 0
  %81 = vmatprep.subr.bf16.mxu0 0
  %82 = vmatpush1.bf16.msra.mxu0 0
  %83 = vmatprep.mubr.bf16.mxu0 0
  %84 = vmatmul.mubr.bf16.gmra.mrb[0].mxu0 %v49
  %v85 = vpop.f32.mrb[0].mxu0
  %v86 = vadd.f32 0.0, %v85
  %v87 = vpop.f32.mrb[0].mxu0
  %v88 = vpop.f32.mrb[0].mxu0
  %v89 = vadd.f32 0.0, %v88
  %v90 = vpop.f32.mrb[0].mxu0
  %91 = vdwg.mxu0
  %v92 = vadd.f32 %v22, %v86
  %v93 = vadd.f32 %v23, %v89
  %vm94 = vcmask 785408
  %95 = vst.msk [vmem:[#allocation2] sm:$0xff] %vm94, %v92
  %96 = vst.msk [vmem:[#allocation2 + $0x8] sm:$0xff] %vm94, %v93
  // Predicated region
  $region18: #{transformer_forward.11} parent=0 // pred_check
    %p97 = pneg %p15
  $region19: #{transformer_forward.11} parent=0 // pred_check_branch
    %99 = sbr.rel (%p97) target = $region21
  $region20: #{transformer_forward.11} parent=0 // pred_region
    %v100 = vld [vmem:[#allocation2] sm:$0xff]
    %v101 = vld [vmem:[#allocation2 + $0x8] sm:$0xff]
    %v102 = vld [vmem:[%s2] sm:$0x1]
    %v104 = vlaneseq
    %v105 = vshrl.u32 %v104, 7
    %v106 = vsub.s32 0, %v105
    %v107 = vrot.slane %v102, %v106
    %v109 = vadd.f32 %v100, %v107
    %v110 = vadd.f32 %v101, %v107
    %v111 = vpack.c.bf16 %v110, %v109
    %v113 = vunpack.c.l.b16 %v111
    %v114 = vunpack.c.h.b16 %v111
    %v115 = vpack.c.b16 %v113, %v113
    %v116 = vpack.c.b16 %v114, %v114
    %vm119 = vcmask 781312
    %120 = vst.msk [vmem:[%s3] sm:$0xf] %vm119, %v115
    %121 = vst.msk [vmem:[%s3 + $0x4] sm:$0xf] %vm119, %v116
  $region21: #{transformer_forward.11} parent=0 // pred_fallthru
    _
  // Predicated region
  $region22: #{transformer_forward.11} parent=0 // pred_check
    _
  $region23: #{transformer_forward.11} parent=0 // pred_check_branch
    %123 = sbr.rel (0) target = $region25
  $region24: #{transformer_forward.11} parent=0 // pred_region
    _
  $region25: #{transformer_forward.11} parent=0 // pred_fallthru
    _
  // Predicated region
  $region26: #{transformer_forward.11} parent=0 // pred_check
    _
  $region27: #{transformer_forward.11} parent=0 // pred_check_branch
    %125 = sbr.rel (0) target = $region29
  $region28: #{transformer_forward.11} parent=0 // pred_region
    _
  $region29: #{transformer_forward.11} parent=0 // pred_fallthru
    _

// kernel: transformer_forward.14
$region0: #{transformer_forward.14}
  #allocation0 [shape = 'u32[]', space=smem, size = 0x4, offset = 0x4, fixed_abs, tag = 'smem constant byte address 0x4 - core index']
  #allocation1 [shape = 'u32[144,128]{1,0:T(1,128)}', space=vmem, size = 0x12000, scoped, tag = 'internal scratch']
  #allocation2 [shape = 'f32[16,128]{1,0:T(8,128)}', space=vmem, size = 0x2000, scoped, tag = 'scratch operand']
  %s0 = inlined_call_operand.vmem [shape: bf16[16,32], index: 0, kind: input, shape index: {}]
  %s1 = inlined_call_operand.vmem [shape: bf16[32,128], index: 1, kind: input, shape index: {}]
  %s2 = inlined_call_operand.vmem [shape: f32[1,128], index: 2, kind: input, shape index: {}]
  %s3 = inlined_call_operand.vmem [shape: bf16[16,128], index: 3, kind: output, shape index: {}]
  %s4 = sld [smem:[#allocation0]]
  $region30: #{transformer_forward.14} parent=0
    _
  %s6 = ssub.s32 1, %s4
  %s7 = scalar_select 0, %s6, %s4
  // Predicated region
  $region2: #{transformer_forward.14} parent=0 // pred_check
    _
  $region3: #{transformer_forward.14} parent=0 // pred_check_branch
    %9 = sbr.rel (0) target = $region5
  $region4: #{transformer_forward.14} parent=0 // pred_region
    _
  $region5: #{transformer_forward.14} parent=0 // pred_fallthru
    _
  // Predicated region
  $region6: #{transformer_forward.14} parent=0 // pred_check
    _
  $region7: #{transformer_forward.14} parent=0 // pred_check_branch
    %11 = sbr.rel (0) target = $region9
  $region8: #{transformer_forward.14} parent=0 // pred_region
    _
  $region9: #{transformer_forward.14} parent=0 // pred_fallthru
    _
  // Predicated region
  $region10: #{transformer_forward.14} parent=0 // pred_check
    _
  $region11: #{transformer_forward.14} parent=0 // pred_check_branch
    %13 = sbr.rel (0) target = $region13
  $region12: #{transformer_forward.14} parent=0 // pred_region
    _
  $region13: #{transformer_forward.14} parent=0 // pred_fallthru
    _
  %p15 = scmp.eq.s32.totalorder 0, 0
  // Predicated region
  $region14: #{transformer_forward.14} parent=0 // pred_check
    %p16 = pneg %p15
  $region15: #{transformer_forward.14} parent=0 // pred_check_branch
    %18 = sbr.rel (%p16) target = $region17
  $region16: #{transformer_forward.14} parent=0 // pred_region
    %19 = vst [vmem:[#allocation2] sm:$0xff] 0.0
    %20 = vst [vmem:[#allocation2 + $0x8] sm:$0xff] 0.0
  $region17: #{transformer_forward.14} parent=0 // pred_fallthru
    _
  %v21 = vld [vmem:[#allocation2] sm:$0xff]
  %v22 = vld [vmem:[#allocation2 + $0x8] sm:$0xff]
  %v23 = vld [vmem:[%s0] sm:$0xf]
  %v24 = vld [vmem:[%s0 + $0x4] sm:$0xf]
  %v25 = vld [vmem:[%s1] sm:$0xf]
  %v26 = vld [vmem:[%s1 + $0x4] sm:$0xf]
  %v27 = vld [vmem:[%s1 + $0x8] sm:$0xf]
  %v28 = vld [vmem:[%s1 + $0xc] sm:$0xf]
  %v31 = vunpack.c.l.b16 %v23
  %v32 = vunpack.c.l.b16 %v24
  %v33 = vpack.c.b16 %v32, %v31
  %v38 = vunpack.c.l.b16 %v25
  %v39 = vunpack.c.l.b16 %v26
  %v40 = vunpack.c.l.b16 %v27
  %v41 = vunpack.c.l.b16 %v28
  %v42 = vpack.c.b16 %v39, %v38
  %v43 = vpack.c.b16 %v41, %v40
  %vm46 = vcmask 261120
  %v48 = vsel %vm46, %v33, 0
  %50 = vmatprep.subr.bf16.mxu0 0
  %51 = vmatpush1.bf16.msra.mxu0 %v42
  %52 = vmatprep.subr.bf16.mxu0 0
  %53 = vmatpush1.bf16.msra.mxu0 %v43
  %54 = vmatprep.subr.bf16.mxu0 0
  %55 = vmatpush1.bf16.msra.mxu0 0
  %56 = vmatprep.subr.bf16.mxu0 0
  %57 = vmatpush1.bf16.msra.mxu0 0
  %58 = vmatprep.subr.bf16.mxu0 0
  %59 = vmatpush1.bf16.msra.mxu0 0
  %60 = vmatprep.subr.bf16.mxu0 0
  %61 = vmatpush1.bf16.msra.mxu0 0
  %62 = vmatprep.subr.bf16.mxu0 0
  %63 = vmatpush1.bf16.msra.mxu0 0
  %64 = vmatprep.subr.bf16.mxu0 0
  %65 = vmatpush1.bf16.msra.mxu0 0
  %66 = vmatprep.subr.bf16.mxu0 0
  %67 = vmatpush1.bf16.msra.mxu0 0
  %68 = vmatprep.subr.bf16.mxu0 0
  %69 = vmatpush1.bf16.msra.mxu0 0
  %70 = vmatprep.subr.bf16.mxu0 0
  %71 = vmatpush1.bf16.msra.mxu0 0
  %72 = vmatprep.subr.bf16.mxu0 0
  %73 = vmatpush1.bf16.msra.mxu0 0
  %74 = vmatprep.subr.bf16.mxu0 0
  %75 = vmatpush1.bf16.msra.mxu0 0
  %76 = vmatprep.subr.bf16.mxu0 0
  %77 = vmatpush1.bf16.msra.mxu0 0
  %78 = vmatprep.subr.bf16.mxu0 0
  %79 = vmatpush1.bf16.msra.mxu0 0
  %80 = vmatprep.subr.bf16.mxu0 0
  %81 = vmatpush1.bf16.msra.mxu0 0
  %82 = vmatprep.mubr.bf16.mxu0 0
  %83 = vmatmul.mubr.bf16.gmra.mrb[0].mxu0 %v48
  %v84 = vpop.f32.mrb[0].mxu0
  %v85 = vadd.f32 0.0, %v84
  %v86 = vpop.f32.mrb[0].mxu0
  %v87 = vpop.f32.mrb[0].mxu0
  %v88 = vadd.f32 0.0, %v87
  %v89 = vpop.f32.mrb[0].mxu0
  %90 = vdwg.mxu0
  %v91 = vadd.f32 %v21, %v85
  %v92 = vadd.f32 %v22, %v88
  %93 = vst [vmem:[#allocation2] sm:$0xff] %v91
  %94 = vst [vmem:[#allocation2 + $0x8] sm:$0xff] %v92
  // Predicated region
  $region18: #{transformer_forward.14} parent=0 // pred_check
    %p95 = pneg %p15
  $region19: #{transformer_forward.14} parent=0 // pred_check_branch
    %97 = sbr.rel (%p95) target = $region21
  $region20: #{transformer_forward.14} parent=0 // pred_region
    %v98 = vld [vmem:[#allocation2] sm:$0xff]
    %v99 = vld [vmem:[#allocation2 + $0x8] sm:$0xff]
    %v100 = vld [vmem:[%s2] sm:$0x1]
    %v102 = vlaneseq
    %v103 = vshrl.u32 %v102, 7
    %v104 = vsub.s32 0, %v103
    %v105 = vrot.slane %v100, %v104
    %v107 = vadd.f32 %v98, %v105
    %v108 = vadd.f32 %v99, %v105
    %v109 = vmul.f32 %v107, 0.5
    %v110 = vmul.f32 %v108, 0.5
    %v111 = vmul.f32 %v107, 0.7978846
    %v112 = vmul.f32 %v108, 0.7978846
    %v113 = vmul.f32 %v107, 0.044715
    %v114 = vmul.f32 %v108, 0.044715
    %v115 = vmul.f32 %v113, %v107
    %v116 = vmul.f32 %v114, %v108
    %v117 = vadd.f32 %v115, 1.0
    %v118 = vadd.f32 %v116, 1.0
    %v119 = vmul.f32 %v111, %v117
    %v120 = vmul.f32 %v112, %v118
    %v121 = vtanh.pop %v119
    %v122 = vtanh.pop %v120
    %v123 = vadd.f32 %v121, 1.0
    %v124 = vadd.f32 %v122, 1.0
    %v125 = vmul.f32 %v109, %v123
    %v126 = vmul.f32 %v110, %v124
    %v127 = vpack.c.bf16 %v126, %v125
    %v129 = vunpack.c.l.b16 %v127
    %v130 = vunpack.c.h.b16 %v127
    %v131 = vpack.c.b16 %v129, %v129
    %v132 = vpack.c.b16 %v130, %v130
    %135 = vst [vmem:[%s3] sm:$0xf] %v131
    %136 = vst [vmem:[%s3 + $0x4] sm:$0xf] %v132
  $region21: #{transformer_forward.14} parent=0 // pred_fallthru
    _
  // Predicated region
  $region22: #{transformer_forward.14} parent=0 // pred_check
    _
  $region23: #{transformer_forward.14} parent=0 // pred_check_branch
    %138 = sbr.rel (0) target = $region25
  $region24: #{transformer_forward.14} parent=0 // pred_region
    _
  $region25: #{transformer_forward.14} parent=0 // pred_fallthru
    _
  // Predicated region
  $region26: #{transformer_forward.14} parent=0 // pred_check
    _
  $region27: #{transformer_forward.14} parent=0 // pred_check_branch
    %140 = sbr.rel (0) target = $region29
  $region28: #{transformer_forward.14} parent=0 // pred_region
    _
  $region29: #{transformer_forward.14} parent=0 // pred_fallthru
    _

// kernel: transformer_forward.13
$region0: #{transformer_forward.13}
  #allocation0 [shape = 'u32[]', space=smem, size = 0x4, offset = 0x4, fixed_abs, tag = 'smem constant byte address 0x4 - core index']
  #allocation1 [shape = 'u32[144,128]{1,0:T(1,128)}', space=vmem, size = 0x12000, scoped, tag = 'internal scratch']
  #allocation2 [shape = 'f32[16,32]{1,0:T(8,128)}', space=vmem, size = 0x2000, scoped, tag = 'scratch operand']
  %s0 = inlined_call_operand.vmem [shape: bf16[16,32], index: 0, kind: input, shape index: {}]
  %s1 = inlined_call_operand.vmem [shape: bf16[32,32], index: 1, kind: input, shape index: {}]
  %s2 = inlined_call_operand.vmem [shape: f32[1,32], index: 2, kind: input, shape index: {}]
  %s3 = inlined_call_operand.vmem [shape: bf16[16,32], index: 3, kind: input, shape index: {}]
  %s4 = inlined_call_operand.vmem [shape: f32[1,32], index: 4, kind: input, shape index: {}]
  %s5 = inlined_call_operand.vmem [shape: f32[1,32], index: 5, kind: input, shape index: {}]
  %s6 = inlined_call_operand.vmem [shape: bf16[16,32], index: 6, kind: output, shape index: {}]
  %s7 = sld [smem:[#allocation0]]
  $region42: #{transformer_forward.13} parent=0
    _
  %s9 = ssub.s32 1, %s7
  %s10 = scalar_select 0, %s9, %s7
  // Predicated region
  $region2: #{transformer_forward.13} parent=0 // pred_check
    _
  $region3: #{transformer_forward.13} parent=0 // pred_check_branch
    %12 = sbr.rel (0) target = $region5
  $region4: #{transformer_forward.13} parent=0 // pred_region
    _
  $region5: #{transformer_forward.13} parent=0 // pred_fallthru
    _
  // Predicated region
  $region6: #{transformer_forward.13} parent=0 // pred_check
    _
  $region7: #{transformer_forward.13} parent=0 // pred_check_branch
    %14 = sbr.rel (0) target = $region9
  $region8: #{transformer_forward.13} parent=0 // pred_region
    _
  $region9: #{transformer_forward.13} parent=0 // pred_fallthru
    _
  // Predicated region
  $region10: #{transformer_forward.13} parent=0 // pred_check
    _
  $region11: #{transformer_forward.13} parent=0 // pred_check_branch
    %16 = sbr.rel (0) target = $region13
  $region12: #{transformer_forward.13} parent=0 // pred_region
    _
  $region13: #{transformer_forward.13} parent=0 // pred_fallthru
    _
  // Predicated region
  $region14: #{transformer_forward.13} parent=0 // pred_check
    _
  $region15: #{transformer_forward.13} parent=0 // pred_check_branch
    %18 = sbr.rel (0) target = $region17
  $region16: #{transformer_forward.13} parent=0 // pred_region
    _
  $region17: #{transformer_forward.13} parent=0 // pred_fallthru
    _
  // Predicated region
  $region18: #{transformer_forward.13} parent=0 // pred_check
    _
  $region19: #{transformer_forward.13} parent=0 // pred_check_branch
    %20 = sbr.rel (0) target = $region21
  $region20: #{transformer_forward.13} parent=0 // pred_region
    _
  $region21: #{transformer_forward.13} parent=0 // pred_fallthru
    _
  // Predicated region
  $region22: #{transformer_forward.13} parent=0 // pred_check
    _
  $region23: #{transformer_forward.13} parent=0 // pred_check_branch
    %22 = sbr.rel (0) target = $region25
  $region24: #{transformer_forward.13} parent=0 // pred_region
    _
  $region25: #{transformer_forward.13} parent=0 // pred_fallthru
    _
  %p24 = scmp.eq.s32.totalorder 0, 0
  // Predicated region
  $region26: #{transformer_forward.13} parent=0 // pred_check
    %p25 = pneg %p24
  $region27: #{transformer_forward.13} parent=0 // pred_check_branch
    %27 = sbr.rel (%p25) target = $region29
  $region28: #{transformer_forward.13} parent=0 // pred_region
    %vm28 = vcmask 261120
    %29 = vst.msk [vmem:[#allocation2] sm:$0xff] %vm28, 0.0
    %30 = vst.msk [vmem:[#allocation2 + $0x8] sm:$0xff] %vm28, 0.0
  $region29: #{transformer_forward.13} parent=0 // pred_fallthru
    _
  %v31 = vld [vmem:[#allocation2] sm:$0xff]
  %v32 = vld [vmem:[#allocation2 + $0x8] sm:$0xff]
  %v33 = vld [vmem:[%s0] sm:$0xf]
  %v34 = vld [vmem:[%s0 + $0x4] sm:$0xf]
  %v35 = vld [vmem:[%s1] sm:$0xf]
  %v36 = vld [vmem:[%s1 + $0x4] sm:$0xf]
  %v37 = vld [vmem:[%s1 + $0x8] sm:$0xf]
  %v38 = vld [vmem:[%s1 + $0xc] sm:$0xf]
  %v41 = vunpack.c.l.b16 %v33
  %v42 = vunpack.c.l.b16 %v34
  %v43 = vpack.c.b16 %v42, %v41
  %v48 = vunpack.c.l.b16 %v35
  %v49 = vunpack.c.l.b16 %v36
  %v50 = vunpack.c.l.b16 %v37
  %v51 = vunpack.c.l.b16 %v38
  %v52 = vpack.c.b16 %v49, %v48
  %v53 = vpack.c.b16 %v51, %v50
  %vm56 = vcmask 261120
  %v58 = vsel %vm56, %v43, 0
  %60 = vmatprep.subr.bf16.mxu0 0
  %61 = vmatpush1.bf16.msra.mxu0 %v52
  %62 = vmatprep.subr.bf16.mxu0 0
  %63 = vmatpush1.bf16.msra.mxu0 %v53
  %64 = vmatprep.subr.bf16.mxu0 0
  %65 = vmatpush1.bf16.msra.mxu0 0
  %66 = vmatprep.subr.bf16.mxu0 0
  %67 = vmatpush1.bf16.msra.mxu0 0
  %68 = vmatprep.subr.bf16.mxu0 0
  %69 = vmatpush1.bf16.msra.mxu0 0
  %70 = vmatprep.subr.bf16.mxu0 0
  %71 = vmatpush1.bf16.msra.mxu0 0
  %72 = vmatprep.subr.bf16.mxu0 0
  %73 = vmatpush1.bf16.msra.mxu0 0
  %74 = vmatprep.subr.bf16.mxu0 0
  %75 = vmatpush1.bf16.msra.mxu0 0
  %76 = vmatprep.subr.bf16.mxu0 0
  %77 = vmatpush1.bf16.msra.mxu0 0
  %78 = vmatprep.subr.bf16.mxu0 0
  %79 = vmatpush1.bf16.msra.mxu0 0
  %80 = vmatprep.subr.bf16.mxu0 0
  %81 = vmatpush1.bf16.msra.mxu0 0
  %82 = vmatprep.subr.bf16.mxu0 0
  %83 = vmatpush1.bf16.msra.mxu0 0
  %84 = vmatprep.subr.bf16.mxu0 0
  %85 = vmatpush1.bf16.msra.mxu0 0
  %86 = vmatprep.subr.bf16.mxu0 0
  %87 = vmatpush1.bf16.msra.mxu0 0
  %88 = vmatprep.subr.bf16.mxu0 0
  %89 = vmatpush1.bf16.msra.mxu0 0
  %90 = vmatprep.subr.bf16.mxu0 0
  %91 = vmatpush1.bf16.msra.mxu0 0
  %92 = vmatprep.mubr.bf16.mxu0 0
  %93 = vmatmul.mubr.bf16.gmra.mrb[0].mxu0 %v58
  %v94 = vpop.f32.mrb[0].mxu0
  %v95 = vadd.f32 0.0, %v94
  %v96 = vpop.f32.mrb[0].mxu0
  %v97 = vpop.f32.mrb[0].mxu0
  %v98 = vadd.f32 0.0, %v97
  %v99 = vpop.f32.mrb[0].mxu0
  %100 = vdwg.mxu0
  %v101 = vadd.f32 %v31, %v95
  %v102 = vadd.f32 %v32, %v98
  %103 = vst.msk [vmem:[#allocation2] sm:$0xff] %vm56, %v101
  %104 = vst.msk [vmem:[#allocation2 + $0x8] sm:$0xff] %vm56, %v102
  // Predicated region
  $region30: #{transformer_forward.13} parent=0 // pred_check
    %p105 = pneg %p24
  $region31: #{transformer_forward.13} parent=0 // pred_check_branch
    %107 = sbr.rel (%p105) target = $region33
  $region32: #{transformer_forward.13} parent=0 // pred_region
    %v108 = vld [vmem:[#allocation2] sm:$0xff]
    %v109 = vld [vmem:[#allocation2 + $0x8] sm:$0xff]
    %v110 = vld [vmem:[%s2] sm:$0x1]
    %v112 = vlaneseq
    %v113 = vshrl.u32 %v112, 7
    %v114 = vsub.s32 0, %v113
    %v115 = vrot.slane %v110, %v114
    %v117 = vadd.f32 %v108, %v115
    %v118 = vadd.f32 %v109, %v115
    %v119 = vld [vmem:[%s3] sm:$0xf]
    %v120 = vld [vmem:[%s3 + $0x4] sm:$0xf]
    %v121 = vunpack.c.l.bf16 %v119
    %v122 = vunpack.c.l.bf16 %v120
    %v123 = vadd.f32 %v117, %v121
    %v124 = vadd.f32 %v118, %v122
    %v125 = vsel %vm56, %v123, 0.0
    %126 = vadd.xlane.f32.xlu0 %v125
    %v127 = vpop.xlane.xlu0 %126
    %v128 = vsel %vm56, %v124, 0.0
    %129 = vadd.xlane.f32.xlu0 %v128
    %v130 = vpop.xlane.xlu0 %129
    %v131 = vrcp.pop 32.0
    %v132 = vmul.f32 %v127, %v131
    %v133 = vmul.f32 %v130, %v131
    %v134 = vsub.f32 %v123, %v132
    %v135 = vsub.f32 %v124, %v133
    %v136 = vmul.f32 %v134, %v134
    %v137 = vmul.f32 %v135, %v135
    %v138 = vsel %vm56, %v136, 0.0
    %139 = vadd.xlane.f32.xlu0 %v138
    %v140 = vpop.xlane.xlu0 %139
    %v141 = vsel %vm56, %v137, 0.0
    %142 = vadd.xlane.f32.xlu0 %v141
    %v143 = vpop.xlane.xlu0 %142
    %v144 = vmul.f32 %v140, %v131
    %v145 = vmul.f32 %v143, %v131
    %v146 = vadd.f32 %v144, 1e-05
    %v147 = vadd.f32 %v145, 1e-05
    %v148 = vrsqrt.pop %v146
    %v149 = vrsqrt.pop %v147
    %v150 = vmul.f32 %v134, %v148
    %v151 = vmul.f32 %v135, %v149
    %v152 = vld [vmem:[%s4] sm:$0x1]
    %v154 = vlaneseq
    %v155 = vshrl.u32 %v154, 7
    %v156 = vsub.s32 0, %v155
    %v157 = vrot.slane %v152, %v156
    %v159 = vmul.f32 %v150, %v157
    %v160 = vmul.f32 %v151, %v157
    %v161 = vld [vmem:[%s5] sm:$0x1]
    %v163 = vlaneseq
    %v164 = vshrl.u32 %v163, 7
    %v165 = vsub.s32 0, %v164
    %v166 = vrot.slane %v161, %v165
    %v168 = vadd.f32 %v159, %v166
    %v169 = vadd.f32 %v160, %v166
    %v170 = vpack.c.bf16 %v169, %v168
    %v172 = vunpack.c.l.b16 %v170
    %v173 = vunpack.c.h.b16 %v170
    %v174 = vpack.c.b16 %v172, %v172
    %v175 = vpack.c.b16 %v173, %v173
    %vm178 = vcmask 257024
    %179 = vst.msk [vmem:[%s6] sm:$0xf] %vm178, %v174
    %180 = vst.msk [vmem:[%s6 + $0x4] sm:$0xf] %vm178, %v175
  $region33: #{transformer_forward.13} parent=0 // pred_fallthru
    _
  // Predicated region
  $region34: #{transformer_forward.13} parent=0 // pred_check
    _
  $region35: #{transformer_forward.13} parent=0 // pred_check_branch
    %182 = sbr.rel (0) target = $region37
  $region36: #{transformer_forward.13} parent=0 // pred_region
    _
  $region37: #{transformer_forward.13} parent=0 // pred_fallthru
    _
  // Predicated region
  $region38: #{transformer_forward.13} parent=0 // pred_check
    _
  $region39: #{transformer_forward.13} parent=0 // pred_check_branch
    %184 = sbr.rel (0) target = $region41
  $region40: #{transformer_forward.13} parent=0 // pred_region
    _
  $region41: #{transformer_forward.13} parent=0 // pred_fallthru
    _

// kernel: transformer_forward.12
$region0: #{transformer_forward.12}
  #allocation0 [shape = 'u32[]', space=smem, size = 0x4, offset = 0x4, fixed_abs, tag = 'smem constant byte address 0x4 - core index']
  #allocation1 [shape = 'u32[144,128]{1,0:T(1,128)}', space=vmem, size = 0x12000, scoped, tag = 'internal scratch']
  %s0 = inlined_call_operand.vmem [shape: bf16[2,8,96], index: 0, kind: input, shape index: {}]
  %s1 = inlined_call_operand.vmem [shape: f32[2,1,8], index: 1, kind: input, shape index: {}]
  %s2 = inlined_call_operand.vmem [shape: bf16[2,8,32], index: 2, kind: output, shape index: {}]
  %s3 = sld [smem:[#allocation0]]
  $region41: #{transformer_forward.12} parent=0
    _
  %s5 = ssub.s32 1, %s3
  %s6 = scalar_select 0, %s5, %s3
  loop: start=0, step=1, limit=4
  $region2: #{transformer_forward.12} parent=0 // loop_pre_header
    _
  $region3: #{transformer_forward.12} parent=0 // loop_header
    %s8 = sphi 0, %s12
    %p9 = scmp.ge.s32.totalorder %s8, 4
    %s15 = sphi 0, %s27
    %s16 = sphi 0, %s23
    %s17 = sphi 0, %s15
    %s18 = sphi 0, %s16
    %s19 = sphi 0, %s17
    %s20 = sphi 0, %s18
    %s30 = sphi 0, %s32
    %s33 = sphi 0, %s30
    %s34 = sphi 0, %s33
    %s50 = sphi 0, %s34
    %s56 = sphi 0, %s58
    %s59 = sphi 0, %s56
    %s60 = sphi 0, %s59
    %s76 = sphi 0, %s60
    %s84 = sphi 0, %s86
    %s87 = sphi 0, %s84
    %s88 = sphi 0, %s87
    %s104 = sphi 0, %s88
  $region4: #{transformer_forward.12} parent=0 // loop_header_branch
    %11 = sbr.rel (%p9) target = $region8
  $region5: #{transformer_forward.12} parent=0 // loop_body
    %s13 = ssub.s32 %s8, 1
    %s14 = ssub.s32 %s8, 2
    %s21 = sadd.s32 1, %s16
    %p22 = scmp.ge.s32.totalorder %s21, 1
    %s23 = scalar_select %p22, 0, %s21
    %s24 = sadd.s32 1, %s15
    %s25 = scalar_select %p22, %s24, %s15
    %p26 = scmp.ge.s32.totalorder %s25, 2
    %s27 = scalar_select %p26, 0, %s25
    %s28 = ssub.s32 %s15, %s27
    %p29 = scmp.eq.s32.totalorder %s28, 0
    %s31 = sadd.s32 %s30, 1
    %s32 = scalar_select %p29, %s30, %s31
    %p35 = pneg %p29
    %p36 = scmp.eq.s32.totalorder %s8, 1
    %p37 = por %p35, %p36
    %p38 = scmp.ne.s32.totalorder %s30, %s33
    %p39 = scmp.eq.s32.totalorder %s8, 0
    %p40 = por %p38, %p39
    %p41 = scmp.ne.s32.totalorder %s30, %s33
    %p42 = scmp.eq.s32.totalorder %s13, 1
    %p43 = por %p41, %p42
    %p44 = scmp.ne.s32.totalorder %s33, %s34
    %p45 = scmp.eq.s32.totalorder %s13, 0
    %p46 = por %p44, %p45
    %p47 = scmp.ne.s32.totalorder %s33, %s34
    %p48 = scmp.eq.s32.totalorder %s14, 1
    %p49 = por %p47, %p48
    %p51 = scmp.ne.s32.totalorder %s34, %s50
    %p52 = scmp.eq.s32.totalorder %s14, 0
    %p53 = por %p51, %p52
    %s54 = ssub.s32 %s15, %s27
    %p55 = scmp.eq.s32.totalorder %s54, 0
    %s57 = sadd.s32 %s56, 1
    %s58 = scalar_select %p55, %s56, %s57
    %p61 = pneg %p55
    %p62 = scmp.eq.s32.totalorder %s8, 1
    %p63 = por %p61, %p62
    %p64 = scmp.ne.s32.totalorder %s56, %s59
    %p65 = scmp.eq.s32.totalorder %s8, 0
    %p66 = por %p64, %p65
    %p67 = scmp.ne.s32.totalorder %s56, %s59
    %p68 = scmp.eq.s32.totalorder %s13, 1
    %p69 = por %p67, %p68
    %p70 = scmp.ne.s32.totalorder %s59, %s60
    %p71 = scmp.eq.s32.totalorder %s13, 0
    %p72 = por %p70, %p71
    %p73 = scmp.ne.s32.totalorder %s59, %s60
    %p74 = scmp.eq.s32.totalorder %s14, 1
    %p75 = por %p73, %p74
    %p77 = scmp.ne.s32.totalorder %s60, %s76
    %p78 = scmp.eq.s32.totalorder %s14, 0
    %p79 = por %p77, %p78
    %s80 = ssub.s32 %s15, %s27
    %s81 = ssub.s32 %s16, %s23
    %s82 = sor.u32 %s80, %s81
    %p83 = scmp.eq.s32.totalorder %s82, 0
    %s85 = sadd.s32 %s84, 1
    %s86 = scalar_select %p83, %s84, %s85
    %p89 = pneg %p83
    %p90 = scmp.eq.s32.totalorder %s8, 1
    %p91 = por %p89, %p90
    %p92 = scmp.ne.s32.totalorder %s84, %s87
    %p93 = scmp.eq.s32.totalorder %s8, 0
    %p94 = por %p92, %p93
    %p95 = scmp.ne.s32.totalorder %s84, %s87
    %p96 = scmp.eq.s32.totalorder %s13, 1
    %p97 = por %p95, %p96
    %p98 = scmp.ne.s32.totalorder %s87, %s88
    %p99 = scmp.eq.s32.totalorder %s13, 0
    %p100 = por %p98, %p99
    %p101 = scmp.ne.s32.totalorder %s87, %s88
    %p102 = scmp.eq.s32.totalorder %s14, 1
    %p103 = por %p101, %p102
    %p105 = scmp.ne.s32.totalorder %s88, %s104
    %p106 = scmp.eq.s32.totalorder %s14, 0
    %p107 = por %p105, %p106
    %p108 = scmp.le.s32.totalorder 1, %s8
    %p109 = scmp.lt.s32.totalorder %s8, 3
    %p110 = pnand %p108, %p109
    %p111 = pneg %p110
    // Predicated region
    $region9: #{transformer_forward.12} parent=5 // pred_check
      _
    $region10: #{transformer_forward.12} parent=5 // pred_check_branch
      %113 = sbr.rel (%p110) target = $region12
    $region11: #{transformer_forward.12} parent=5 // pred_region
      %s114 = ssub.s32 %s8, 1
    $region12: #{transformer_forward.12} parent=5 // pred_fallthru
      _
    %p115 = scmp.lt.s32.totalorder %s8, 2
    // Predicated region
    $region13: #{transformer_forward.12} parent=5 // pred_check
      %p116 = pneg %p115
    $region14: #{transformer_forward.12} parent=5 // pred_check_branch
      %118 = sbr.rel (%p116) target = $region16
    $region15: #{transformer_forward.12} parent=5 // pred_region
      // Predicated region
      $region17: #{transformer_forward.12} parent=15 // pred_check
        %p119 = pneg %p40
      $region18: #{transformer_forward.12} parent=15 // pred_check_branch
        %121 = sbr.rel (%p119) target = $region20
      $region19: #{transformer_forward.12} parent=15 // pred_region
        %p122 = scmp.lt.s32.totalorder %s15, 1
        %s123 = scalar_select %p122, %s15, 1
        %s124 = smul.addr %s123, 4
        %s125 = scalar_lea.vmem %s0, %s124
      $region20: #{transformer_forward.12} parent=15 // pred_fallthru
        _
      // Predicated region
      $region21: #{transformer_forward.12} parent=15 // pred_check
        %p126 = pneg %p66
      $region22: #{transformer_forward.12} parent=15 // pred_check_branch
        %128 = sbr.rel (%p126) target = $region24
      $region23: #{transformer_forward.12} parent=15 // pred_region
        %p129 = scmp.lt.s32.totalorder %s15, 1
        %s130 = scalar_select %p129, %s15, 1
        %s131 = scalar_lea.vmem %s1, %s130
      $region24: #{transformer_forward.12} parent=15 // pred_fallthru
        _
    $region16: #{transformer_forward.12} parent=5 // pred_fallthru
      _
    %p132 = scmp.le.s32.totalorder 1, %s8
    %p133 = scmp.lt.s32.totalorder %s8, 3
    %p134 = pnand %p132, %p133
    %p135 = pneg %p134
    // Predicated region
    $region25: #{transformer_forward.12} parent=5 // pred_check
      _
    $region26: #{transformer_forward.12} parent=5 // pred_check_branch
      %137 = sbr.rel (%p134) target = $region28
    $region27: #{transformer_forward.12} parent=5 // pred_region
      %s138 = ssub.s32 %s8, 1
      %p139 = scmp.lt.s32.totalorder %s17, 1
      %s140 = scalar_select %p139, %s17, 1
      %s141 = smul.addr %s140, 4
      %s142 = scalar_lea.vmem %s0, %s141
      %p143 = pneg %p46
      %p144 = pneg %p43
      %p145 = scmp.lt.s32.totalorder %s17, 1
      %s146 = scalar_select %p145, %s17, 1
      %s147 = scalar_lea.vmem %s1, %s146
      %p148 = pneg %p72
      %p149 = pneg %p69
      %p150 = pneg %p100
      %p151 = pneg %p97
      %p152 = scmp.lt.s32.totalorder %s17, 1
      %s153 = scalar_select %p152, %s17, 1
      %p154 = scmp.lt.s32.totalorder %s18, 0
      %s155 = scalar_select %p154, %s18, 0
      %s156 = sadd.s32 %s155, %s153
      %s157 = smul.addr %s156, 4
      %s158 = scalar_lea.vmem %s2, %s157
      %p159 = scmp.lt.s32.totalorder %s17, 1
      %s160 = scalar_select %p159, %s17, 1
      %s161 = smul.addr %s160, 4
      %s162 = scalar_lea.vmem %s0, %s161
      %p163 = scmp.lt.s32.totalorder %s17, 1
      %s164 = scalar_select %p163, %s17, 1
      %s165 = scalar_lea.vmem %s1, %s164
      %p166 = scmp.lt.s32.totalorder %s17, 1
      %s167 = scalar_select %p166, %s17, 1
      %p168 = scmp.lt.s32.totalorder %s18, 0
      %s169 = scalar_select %p168, %s18, 0
      %s170 = sadd.s32 %s169, %s167
      %s171 = smul.addr %s170, 4
      %s172 = scalar_lea.vmem %s2, %s171
      %s175 = smul.u32 %s18, 8
      %v176 = vlaneseq
      %v177 = vshrl.u32 %v176, 7
      %v178 = vstv %s175
      %v179 = vadd.s32 %v177, %v178
      %v180 = vlaneseq
      %v181 = vand.u32 %v180, 127
      %vm182 = vcmp.le.s32.totalorder %v181, %v179
      %v183 = vsel %vm182, 0.0, -1e+09
      %v184 = vld [vmem:[%s165] sm:$0x1]
      %v186 = vlaneseq
      %v187 = vshrl.u32 %v186, 7
      %v188 = vsub.s32 0, %v187
      %v189 = vrot.slane %v184, %v188
      %v191 = vadd.f32 %v183, %v189
      %s192 = sshra.s32 %s175, 3
      %s193 = sand.u32 %s175, 7
      %s194 = smul.addr %s192, 4
      %s195 = scalar_lea.vmem %s162, %s194
      %v196 = vld [vmem:[%s195] sm:$0xf]
      %v197 = vld [vmem:[%s162] sm:$0xf]
      %v198 = vmul.bf16 %v196, 1052065461
      %v200 = vunpack.c.l.b16 %v197
      %v201 = vpack.c.b16 %v200, %v200
      %202 = vrot.lane.b32.xlu0 %v201, 96
      %v203 = vpop.permute.xlu0 %202
      %vm204 = vcmask 64512
      %v206 = vsel %vm204, %v198, 0
      %v209 = vsel %vm204, %v203, 0
      %211 = vmatprep.subr.bf16.mxu0 0
      %212 = vmatpush1.bf16.xpose.msra.mxu0 %v209
      %213 = vmatprep.subr.bf16.mxu0 0
      %214 = vmatpush1.bf16.xpose.msra.mxu0 0
      %215 = vmatprep.subr.bf16.mxu0 0
      %216 = vmatpush1.bf16.xpose.msra.mxu0 0
      %217 = vmatprep.subr.bf16.mxu0 0
      %218 = vmatpush1.bf16.xpose.msra.mxu0 0
      %219 = vmatprep.subr.bf16.mxu0 0
      %220 = vmatpush1.bf16.xpose.msra.mxu0 0
      %221 = vmatprep.subr.bf16.mxu0 0
      %222 = vmatpush1.bf16.xpose.msra.mxu0 0
      %223 = vmatprep.subr.bf16.mxu0 0
      %224 = vmatpush1.bf16.xpose.msra.mxu0 0
      %225 = vmatprep.subr.bf16.mxu0 0
      %226 = vmatpush1.bf16.xpose.msra.mxu0 0
      %227 = vmatprep.subr.bf16.mxu0 0
      %228 = vmatpush1.bf16.xpose.msra.mxu0 0
      %229 = vmatprep.subr.bf16.mxu0 0
      %230 = vmatpush1.bf16.xpose.msra.mxu0 0
      %231 = vmatprep.subr.bf16.mxu0 0
      %232 = vmatpush1.bf16.xpose.msra.mxu0 0
      %233 = vmatprep.subr.bf16.mxu0 0
      %234 = vmatpush1.bf16.xpose.msra.mxu0 0
      %235 = vmatprep.subr.bf16.mxu0 0
      %236 = vmatpush1.bf16.xpose.msra.mxu0 0
      %237 = vmatprep.subr.bf16.mxu0 0
      %238 = vmatpush1.bf16.xpose.msra.mxu0 0
      %239 = vmatprep.subr.bf16.mxu0 0
      %240 = vmatpush1.bf16.xpose.msra.mxu0 0
      %241 = vmatprep.subr.bf16.mxu0 0
      %242 = vmatpush1.bf16.xpose.msra.mxu0 0
      %243 = vmatprep.mubr.bf16.mxu0 0
      %244 = vmatmul.mubr.bf16.gmra.mrb[0].mxu0 %v206
      %v245 = vpop.f32.mrb[0].mxu0
      %v246 = vadd.f32 %v191, %v245
      %v247 = vpop.f32.mrb[0].mxu0
      %v248 = vpop.f32.mrb[0].mxu0
      %v249 = vpop.f32.mrb[0].mxu0
      %250 = vdwg.mxu0
      %v251 = vsel %vm204, %v246, -inf
      %252 = vmax.xlane.f32.xlu0 %v251
      %v253 = vpop.xlane.xlu0 %252
      %v254 = vsub.f32 %v246, %v253
      %v255 = vmul.f32 %v254, 1.442695
      %v256 = vpow.pop %v255
      %v257 = vsel %vm204, %v256, 0.0
      %258 = vadd.xlane.f32.xlu0 %v257
      %v259 = vpop.xlane.xlu0 %258
      %v260 = vpack.c.bf16 %v256, %v256
      %261 = vrot.lane.b32.xlu0 %v201, 64
      %v262 = vpop.permute.xlu0 %261
      %v264 = vsel %vm204, %v260, 0
      %vm266 = vcmask 1043456
      %v268 = vsel %vm266, %v262, 0
      %270 = vmatprep.subr.bf16.mxu0 0
      %271 = vmatpush1.bf16.msra.mxu0 %v268
      %272 = vmatprep.subr.bf16.mxu0 0
      %273 = vmatpush1.bf16.msra.mxu0 0
      %274 = vmatprep.subr.bf16.mxu0 0
      %275 = vmatpush1.bf16.msra.mxu0 0
      %276 = vmatprep.subr.bf16.mxu0 0
      %277 = vmatpush1.bf16.msra.mxu0 0
      %278 = vmatprep.subr.bf16.mxu0 0
      %279 = vmatpush1.bf16.msra.mxu0 0
      %280 = vmatprep.subr.bf16.mxu0 0
      %281 = vmatpush1.bf16.msra.mxu0 0
      %282 = vmatprep.subr.bf16.mxu0 0
      %283 = vmatpush1.bf16.msra.mxu0 0
      %284 = vmatprep.subr.bf16.mxu0 0
      %285 = vmatpush1.bf16.msra.mxu0 0
      %286 = vmatprep.subr.bf16.mxu0 0
      %287 = vmatpush1.bf16.msra.mxu0 0
      %288 = vmatprep.subr.bf16.mxu0 0
      %289 = vmatpush1.bf16.msra.mxu0 0
      %290 = vmatprep.subr.bf16.mxu0 0
      %291 = vmatpush1.bf16.msra.mxu0 0
      %292 = vmatprep.subr.bf16.mxu0 0
      %293 = vmatpush1.bf16.msra.mxu0 0
      %294 = vmatprep.subr.bf16.mxu0 0
      %295 = vmatpush1.bf16.msra.mxu0 0
      %296 = vmatprep.subr.bf16.mxu0 0
      %297 = vmatpush1.bf16.msra.mxu0 0
      %298 = vmatprep.subr.bf16.mxu0 0
      %299 = vmatpush1.bf16.msra.mxu0 0
      %300 = vmatprep.subr.bf16.mxu0 0
      %301 = vmatpush1.bf16.msra.mxu0 0
      %302 = vmatprep.mubr.bf16.mxu0 0
      %303 = vmatmul.mubr.bf16.gmra.mrb[0].mxu0 %v264
      %v304 = vpop.f32.mrb[0].mxu0
      %v305 = vadd.f32 0.0, %v304
      %v306 = vpop.f32.mrb[0].mxu0
      %v307 = vpop.f32.mrb[0].mxu0
      %v308 = vpop.f32.mrb[0].mxu0
      %309 = vdwg.mxu0
      %v310 = vrcp.pop %v259
      %v311 = vmul.f32 %v305, %v310
      %v313 = vunpack.c.l.b16 %v198
      %v314 = vpack.c.b16 %v313, %v313
      %315 = vrot.lane.b32.xlu0 %v314, 120
      %v316 = vpop.permute.xlu0 %315
      %317 = vrot.lane.b32.xlu0 %v201, 88
      %v318 = vpop.permute.xlu0 %317
      %v320 = vsel %vm204, %v316, 0
      %v323 = vsel %vm204, %v318, 0
      %325 = vmatprep.subr.bf16.mxu0 0
      %326 = vmatpush1.bf16.xpose.msra.mxu0 %v323
      %327 = vmatprep.subr.bf16.mxu0 0
      %328 = vmatpush1.bf16.xpose.msra.mxu0 0
      %329 = vmatprep.subr.bf16.mxu0 0
      %330 = vmatpush1.bf16.xpose.msra.mxu0 0
      %331 = vmatprep.subr.bf16.mxu0 0
      %332 = vmatpush1.bf16.xpose.msra.mxu0 0
      %333 = vmatprep.subr.bf16.mxu0 0
      %334 = vmatpush1.bf16.xpose.msra.mxu0 0
      %335 = vmatprep.subr.bf16.mxu0 0
      %336 = vmatpush1.bf16.xpose.msra.mxu0 0
      %337 = vmatprep.subr.bf16.mxu0 0
      %338 = vmatpush1.bf16.xpose.msra.mxu0 0
      %339 = vmatprep.subr.bf16.mxu0 0
      %340 = vmatpush1.bf16.xpose.msra.mxu0 0
      %341 = vmatprep.subr.bf16.mxu0 0
      %342 = vmatpush1.bf16.xpose.msra.mxu0 0
      %343 = vmatprep.subr.bf16.mxu0 0
      %344 = vmatpush1.bf16.xpose.msra.mxu0 0
      %345 = vmatprep.subr.bf16.mxu0 0
      %346 = vmatpush1.bf16.xpose.msra.mxu0 0
      %347 = vmatprep.subr.bf16.mxu0 0
      %348 = vmatpush1.bf16.xpose.msra.mxu0 0
      %349 = vmatprep.subr.bf16.mxu0 0
      %350 = vmatpush1.bf16.xpose.msra.mxu0 0
      %351 = vmatprep.subr.bf16.mxu0 0
      %352 = vmatpush1.bf16.xpose.msra.mxu0 0
      %353 = vmatprep.subr.bf16.mxu0 0
      %354 = vmatpush1.bf16.xpose.msra.mxu0 0
      %355 = vmatprep.subr.bf16.mxu0 0
      %356 = vmatpush1.bf16.xpose.msra.mxu0 0
      %357 = vmatprep.mubr.bf16.mxu0 0
      %358 = vmatmul.mubr.bf16.gmra.mrb[0].mxu0 %v320
      %v359 = vpop.f32.mrb[0].mxu0
      %v360 = vadd.f32 %v191, %v359
      %v361 = vpop.f32.mrb[0].mxu0
      %v362 = vpop.f32.mrb[0].mxu0
      %v363 = vpop.f32.mrb[0].mxu0
      %364 = vdwg.mxu0
      %v365 = vsel %vm204, %v360, -inf
      %366 = vmax.xlane.f32.xlu0 %v365
      %v367 = vpop.xlane.xlu0 %366
      %v368 = vsub.f32 %v360, %v367
      %v369 = vmul.f32 %v368, 1.442695
      %v370 = vpow.pop %v369
      %v371 = vsel %vm204, %v370, 0.0
      %372 = vadd.xlane.f32.xlu0 %v371
      %v373 = vpop.xlane.xlu0 %372
      %v374 = vpack.c.bf16 %v370, %v370
      %375 = vrot.lane.b32.xlu0 %v201, 56
      %v376 = vpop.permute.xlu0 %375
      %v378 = vsel %vm204, %v374, 0
      %v381 = vsel %vm266, %v376, 0
      %383 = vmatprep.subr.bf16.mxu0 0
      %384 = vmatpush1.bf16.msra.mxu0 %v381
      %385 = vmatprep.subr.bf16.mxu0 0
      %386 = vmatpush1.bf16.msra.mxu0 0
      %387 = vmatprep.subr.bf16.mxu0 0
      %388 = vmatpush1.bf16.msra.mxu0 0
      %389 = vmatprep.subr.bf16.mxu0 0
      %390 = vmatpush1.bf16.msra.mxu0 0
      %391 = vmatprep.subr.bf16.mxu0 0
      %392 = vmatpush1.bf16.msra.mxu0 0
      %393 = vmatprep.subr.bf16.mxu0 0
      %394 = vmatpush1.bf16.msra.mxu0 0
      %395 = vmatprep.subr.bf16.mxu0 0
      %396 = vmatpush1.bf16.msra.mxu0 0
      %397 = vmatprep.subr.bf16.mxu0 0
      %398 = vmatpush1.bf16.msra.mxu0 0
      %399 = vmatprep.subr.bf16.mxu0 0
      %400 = vmatpush1.bf16.msra.mxu0 0
      %401 = vmatprep.subr.bf16.mxu0 0
      %402 = vmatpush1.bf16.msra.mxu0 0
      %403 = vmatprep.subr.bf16.mxu0 0
      %404 = vmatpush1.bf16.msra.mxu0 0
      %405 = vmatprep.subr.bf16.mxu0 0
      %406 = vmatpush1.bf16.msra.mxu0 0
      %407 = vmatprep.subr.bf16.mxu0 0
      %408 = vmatpush1.bf16.msra.mxu0 0
      %409 = vmatprep.subr.bf16.mxu0 0
      %410 = vmatpush1.bf16.msra.mxu0 0
      %411 = vmatprep.subr.bf16.mxu0 0
      %412 = vmatpush1.bf16.msra.mxu0 0
      %413 = vmatprep.subr.bf16.mxu0 0
      %414 = vmatpush1.bf16.msra.mxu0 0
      %415 = vmatprep.mubr.bf16.mxu0 0
      %416 = vmatmul.mubr.bf16.gmra.mrb[0].mxu0 %v378
      %v417 = vpop.f32.mrb[0].mxu0
      %v418 = vadd.f32 0.0, %v417
      %v419 = vpop.f32.mrb[0].mxu0
      %v420 = vpop.f32.mrb[0].mxu0
      %v421 = vpop.f32.mrb[0].mxu0
      %422 = vdwg.mxu0
      %v423 = vrcp.pop %v373
      %v424 = vmul.f32 %v418, %v423
      %425 = vrot.lane.b32.xlu0 %v314, 112
      %v426 = vpop.permute.xlu0 %425
      %427 = vrot.lane.b32.xlu0 %v201, 80
      %v428 = vpop.permute.xlu0 %427
      %v430 = vsel %vm204, %v426, 0
      %v433 = vsel %vm204, %v428, 0
      %435 = vmatprep.subr.bf16.mxu0 0
      %436 = vmatpush1.bf16.xpose.msra.mxu0 %v433
      %437 = vmatprep.subr.bf16.mxu0 0
      %438 = vmatpush1.bf16.xpose.msra.mxu0 0
      %439 = vmatprep.subr.bf16.mxu0 0
      %440 = vmatpush1.bf16.xpose.msra.mxu0 0
      %441 = vmatprep.subr.bf16.mxu0 0
      %442 = vmatpush1.bf16.xpose.msra.mxu0 0
      %443 = vmatprep.subr.bf16.mxu0 0
      %444 = vmatpush1.bf16.xpose.msra.mxu0 0
      %445 = vmatprep.subr.bf16.mxu0 0
      %446 = vmatpush1.bf16.xpose.msra.mxu0 0
      %447 = vmatprep.subr.bf16.mxu0 0
      %448 = vmatpush1.bf16.xpose.msra.mxu0 0
      %449 = vmatprep.subr.bf16.mxu0 0
      %450 = vmatpush1.bf16.xpose.msra.mxu0 0
      %451 = vmatprep.subr.bf16.mxu0 0
      %452 = vmatpush1.bf16.xpose.msra.mxu0 0
      %453 = vmatprep.subr.bf16.mxu0 0
      %454 = vmatpush1.bf16.xpose.msra.mxu0 0
      %455 = vmatprep.subr.bf16.mxu0 0
      %456 = vmatpush1.bf16.xpose.msra.mxu0 0
      %457 = vmatprep.subr.bf16.mxu0 0
      %458 = vmatpush1.bf16.xpose.msra.mxu0 0
      %459 = vmatprep.subr.bf16.mxu0 0
      %460 = vmatpush1.bf16.xpose.msra.mxu0 0
      %461 = vmatprep.subr.bf16.mxu0 0
      %462 = vmatpush1.bf16.xpose.msra.mxu0 0
      %463 = vmatprep.subr.bf16.mxu0 0
      %464 = vmatpush1.bf16.xpose.msra.mxu0 0
      %465 = vmatprep.subr.bf16.mxu0 0
      %466 = vmatpush1.bf16.xpose.msra.mxu0 0
      %467 = vmatprep.mubr.bf16.mxu0 0
      %468 = vmatmul.mubr.bf16.gmra.mrb[0].mxu0 %v430
      %v469 = vpop.f32.mrb[0].mxu0
      %v470 = vadd.f32 %v191, %v469
      %v471 = vpop.f32.mrb[0].mxu0
      %v472 = vpop.f32.mrb[0].mxu0
      %v473 = vpop.f32.mrb[0].mxu0
      %474 = vdwg.mxu0
      %v475 = vsel %vm204, %v470, -inf
      %476 = vmax.xlane.f32.xlu0 %v475
      %v477 = vpop.xlane.xlu0 %476
      %v478 = vsub.f32 %v470, %v477
      %v479 = vmul.f32 %v478, 1.442695
      %v480 = vpow.pop %v479
      %v481 = vsel %vm204, %v480, 0.0
      %482 = vadd.xlane.f32.xlu0 %v481
      %v483 = vpop.xlane.xlu0 %482
      %v484 = vpack.c.bf16 %v480, %v480
      %485 = vrot.lane.b32.xlu0 %v201, 48
      %v486 = vpop.permute.xlu0 %485
      %v488 = vsel %vm204, %v484, 0
      %v491 = vsel %vm266, %v486, 0
      %493 = vmatprep.subr.bf16.mxu0 0
      %494 = vmatpush1.bf16.msra.mxu0 %v491
      %495 = vmatprep.subr.bf16.mxu0 0
      %496 = vmatpush1.bf16.msra.mxu0 0
      %497 = vmatprep.subr.bf16.mxu0 0
      %498 = vmatpush1.bf16.msra.mxu0 0
      %499 = vmatprep.subr.bf16.mxu0 0
      %500 = vmatpush1.bf16.msra.mxu0 0
      %501 = vmatprep.subr.bf16.mxu0 0
      %502 = vmatpush1.bf16.msra.mxu0 0
      %503 = vmatprep.subr.bf16.mxu0 0
      %504 = vmatpush1.bf16.msra.mxu0 0
      %505 = vmatprep.subr.bf16.mxu0 0
      %506 = vmatpush1.bf16.msra.mxu0 0
      %507 = vmatprep.subr.bf16.mxu0 0
      %508 = vmatpush1.bf16.msra.mxu0 0
      %509 = vmatprep.subr.bf16.mxu0 0
      %510 = vmatpush1.bf16.msra.mxu0 0
      %511 = vmatprep.subr.bf16.mxu0 0
      %512 = vmatpush1.bf16.msra.mxu0 0
      %513 = vmatprep.subr.bf16.mxu0 0
      %514 = vmatpush1.bf16.msra.mxu0 0
      %515 = vmatprep.subr.bf16.mxu0 0
      %516 = vmatpush1.bf16.msra.mxu0 0
      %517 = vmatprep.subr.bf16.mxu0 0
      %518 = vmatpush1.bf16.msra.mxu0 0
      %519 = vmatprep.subr.bf16.mxu0 0
      %520 = vmatpush1.bf16.msra.mxu0 0
      %521 = vmatprep.subr.bf16.mxu0 0
      %522 = vmatpush1.bf16.msra.mxu0 0
      %523 = vmatprep.subr.bf16.mxu0 0
      %524 = vmatpush1.bf16.msra.mxu0 0
      %525 = vmatprep.mubr.bf16.mxu0 0
      %526 = vmatmul.mubr.bf16.gmra.mrb[0].mxu0 %v488
      %v527 = vpop.f32.mrb[0].mxu0
      %v528 = vadd.f32 0.0, %v527
      %v529 = vpop.f32.mrb[0].mxu0
      %v530 = vpop.f32.mrb[0].mxu0
      %v531 = vpop.f32.mrb[0].mxu0
      %532 = vdwg.mxu0
      %v533 = vrcp.pop %v483
      %v534 = vmul.f32 %v528, %v533
      %535 = vrot.lane.b32.xlu0 %v314, 104
      %v536 = vpop.permute.xlu0 %535
      %537 = vrot.lane.b32.xlu0 %v201, 72
      %v538 = vpop.permute.xlu0 %537
      %v540 = vsel %vm204, %v536, 0
      %v543 = vsel %vm204, %v538, 0
      %545 = vmatprep.subr.bf16.mxu0 0
      %546 = vmatpush1.bf16.xpose.msra.mxu0 %v543
      %547 = vmatprep.subr.bf16.mxu0 0
      %548 = vmatpush1.bf16.xpose.msra.mxu0 0
      %549 = vmatprep.subr.bf16.mxu0 0
      %550 = vmatpush1.bf16.xpose.msra.mxu0 0
      %551 = vmatprep.subr.bf16.mxu0 0
      %552 = vmatpush1.bf16.xpose.msra.mxu0 0
      %553 = vmatprep.subr.bf16.mxu0 0
      %554 = vmatpush1.bf16.xpose.msra.mxu0 0
      %555 = vmatprep.subr.bf16.mxu0 0
      %556 = vmatpush1.bf16.xpose.msra.mxu0 0
      %557 = vmatprep.subr.bf16.mxu0 0
      %558 = vmatpush1.bf16.xpose.msra.mxu0 0
      %559 = vmatprep.subr.bf16.mxu0 0
      %560 = vmatpush1.bf16.xpose.msra.mxu0 0
      %561 = vmatprep.subr.bf16.mxu0 0
      %562 = vmatpush1.bf16.xpose.msra.mxu0 0
      %563 = vmatprep.subr.bf16.mxu0 0
      %564 = vmatpush1.bf16.xpose.msra.mxu0 0
      %565 = vmatprep.subr.bf16.mxu0 0
      %566 = vmatpush1.bf16.xpose.msra.mxu0 0
      %567 = vmatprep.subr.bf16.mxu0 0
      %568 = vmatpush1.bf16.xpose.msra.mxu0 0
      %569 = vmatprep.subr.bf16.mxu0 0
      %570 = vmatpush1.bf16.xpose.msra.mxu0 0
      %571 = vmatprep.subr.bf16.mxu0 0
      %572 = vmatpush1.bf16.xpose.msra.mxu0 0
      %573 = vmatprep.subr.bf16.mxu0 0
      %574 = vmatpush1.bf16.xpose.msra.mxu0 0
      %575 = vmatprep.subr.bf16.mxu0 0
      %576 = vmatpush1.bf16.xpose.msra.mxu0 0
      %577 = vmatprep.mubr.bf16.mxu0 0
      %578 = vmatmul.mubr.bf16.gmra.mrb[0].mxu0 %v540
      %v579 = vpop.f32.mrb[0].mxu0
      %v580 = vadd.f32 %v191, %v579
      %v581 = vpop.f32.mrb[0].mxu0
      %v582 = vpop.f32.mrb[0].mxu0
      %v583 = vpop.f32.mrb[0].mxu0
      %584 = vdwg.mxu0
      %v585 = vsel %vm204, %v580, -inf
      %586 = vmax.xlane.f32.xlu0 %v585
      %v587 = vpop.xlane.xlu0 %586
      %v588 = vsub.f32 %v580, %v587
      %v589 = vmul.f32 %v588, 1.442695
      %v590 = vpow.pop %v589
      %v591 = vsel %vm204, %v590, 0.0
      %592 = vadd.xlane.f32.xlu0 %v591
      %v593 = vpop.xlane.xlu0 %592
      %v594 = vpack.c.bf16 %v590, %v590
      %595 = vrot.lane.b32.xlu0 %v201, 40
      %v596 = vpop.permute.xlu0 %595
      %v598 = vsel %vm204, %v594, 0
      %v601 = vsel %vm266, %v596, 0
      %603 = vmatprep.subr.bf16.mxu0 0
      %604 = vmatpush1.bf16.msra.mxu0 %v601
      %605 = vmatprep.subr.bf16.mxu0 0
      %606 = vmatpush1.bf16.msra.mxu0 0
      %607 = vmatprep.subr.bf16.mxu0 0
      %608 = vmatpush1.bf16.msra.mxu0 0
      %609 = vmatprep.subr.bf16.mxu0 0
      %610 = vmatpush1.bf16.msra.mxu0 0
      %611 = vmatprep.subr.bf16.mxu0 0
      %612 = vmatpush1.bf16.msra.mxu0 0
      %613 = vmatprep.subr.bf16.mxu0 0
      %614 = vmatpush1.bf16.msra.mxu0 0
      %615 = vmatprep.subr.bf16.mxu0 0
      %616 = vmatpush1.bf16.msra.mxu0 0
      %617 = vmatprep.subr.bf16.mxu0 0
      %618 = vmatpush1.bf16.msra.mxu0 0
      %619 = vmatprep.subr.bf16.mxu0 0
      %620 = vmatpush1.bf16.msra.mxu0 0
      %621 = vmatprep.subr.bf16.mxu0 0
      %622 = vmatpush1.bf16.msra.mxu0 0
      %623 = vmatprep.subr.bf16.mxu0 0
      %624 = vmatpush1.bf16.msra.mxu0 0
      %625 = vmatprep.subr.bf16.mxu0 0
      %626 = vmatpush1.bf16.msra.mxu0 0
      %627 = vmatprep.subr.bf16.mxu0 0
      %628 = vmatpush1.bf16.msra.mxu0 0
      %629 = vmatprep.subr.bf16.mxu0 0
      %630 = vmatpush1.bf16.msra.mxu0 0
      %631 = vmatprep.subr.bf16.mxu0 0
      %632 = vmatpush1.bf16.msra.mxu0 0
      %633 = vmatprep.subr.bf16.mxu0 0
      %634 = vmatpush1.bf16.msra.mxu0 0
      %635 = vmatprep.mubr.bf16.mxu0 0
      %636 = vmatmul.mubr.bf16.gmra.mrb[0].mxu0 %v598
      %v637 = vpop.f32.mrb[0].mxu0
      %v638 = vadd.f32 0.0, %v637
      %v639 = vpop.f32.mrb[0].mxu0
      %v640 = vpop.f32.mrb[0].mxu0
      %v641 = vpop.f32.mrb[0].mxu0
      %642 = vdwg.mxu0
      %v643 = vrcp.pop %v593
      %v644 = vmul.f32 %v638, %v643
      %646 = vrot.lane.b32.xlu0 %v424, 8
      %v647 = vpop.permute.xlu0 %646
      %650 = vrot.lane.b32.xlu0 %v534, 16
      %v651 = vpop.permute.xlu0 %650
      %654 = vrot.lane.b32.xlu0 %v644, 24
      %v655 = vpop.permute.xlu0 %654
      %v657 = vsel %vm204, %v311, %v647
      %vm658 = vcmask 130048
      %v659 = vsel %vm658, %v657, %v651
      %vm660 = vcmask 195584
      %v661 = vsel %vm660, %v659, %v655
      %v662 = vpack.c.bf16 %v661, %v661
      %vm663 = vcmask 257024
      %664 = vst.msk [vmem:[%s172] sm:$0xf] %vm663, %v662
      %p665 = scmp.lt.s32.totalorder %s17, 1
      %s666 = scalar_select %p665, %s17, 1
      %p667 = scmp.lt.s32.totalorder %s18, 0
      %s668 = scalar_select %p667, %s18, 0
      %s669 = sadd.s32 %s668, %s666
      %s670 = smul.addr %s669, 4
      %s671 = scalar_lea.vmem %s2, %s670
      // Predicated region
      $region29: #{transformer_forward.12} parent=27 // pred_check
        %p672 = pneg %p97
      $region30: #{transformer_forward.12} parent=27 // pred_check_branch
        %674 = sbr.rel (%p672) target = $region32
      $region31: #{transformer_forward.12} parent=27 // pred_region
        _
      $region32: #{transformer_forward.12} parent=27 // pred_fallthru
        _
    $region28: #{transformer_forward.12} parent=5 // pred_fallthru
      _
    %p675 = scmp.le.s32.totalorder 2, %s8
    // Predicated region
    $region33: #{transformer_forward.12} parent=5 // pred_check
      %p676 = pneg %p675
    $region34: #{transformer_forward.12} parent=5 // pred_check_branch
      %678 = sbr.rel (%p676) target = $region36
    $region35: #{transformer_forward.12} parent=5 // pred_region
      %s679 = ssub.s32 %s8, 2
      // Predicated region
      $region37: #{transformer_forward.12} parent=35 // pred_check
        %p680 = pneg %p103
      $region38: #{transformer_forward.12} parent=35 // pred_check_branch
        %682 = sbr.rel (%p680) target = $region40
      $region39: #{transformer_forward.12} parent=35 // pred_region
        %p683 = scmp.lt.s32.totalorder %s19, 1
        %s684 = scalar_select %p683, %s19, 1
        %p685 = scmp.lt.s32.totalorder %s20, 0
        %s686 = scalar_select %p685, %s20, 0
        %s687 = sadd.s32 %s686, %s684
        %s688 = smul.addr %s687, 4
        %s689 = scalar_lea.vmem %s2, %s688
      $region40: #{transformer_forward.12} parent=35 // pred_fallthru
        _
    $region36: #{transformer_forward.12} parent=5 // pred_fallthru
      _
  $region6: #{transformer_forward.12} parent=0 // loop_footer
    %s12 = sadd.s32 1, %s8
  $region7: #{transformer_forward.12} parent=0 // loop_footer_branch
    %7 = sbr.rel target = $region3
  $region8: #{transformer_forward.12} parent=0 // loop_exit
    _

// kernel: transformer_forward.21
$region0: #{transformer_forward.21}
  #allocation0 [shape = 'u32[]', space=smem, size = 0x4, offset = 0x4, fixed_abs, tag = 'smem constant byte address 0x4 - core index']
  #allocation1 [shape = 'u32[144,128]{1,0:T(1,128)}', space=vmem, size = 0x12000, scoped, tag = 'internal scratch']
  #allocation2 [shape = 'f32[16,64]{1,0:T(8,128)}', space=vmem, size = 0x2000, scoped, tag = 'scratch operand']
  %s0 = inlined_call_operand.vmem [shape: bf16[16,32], index: 0, kind: input, shape index: {}]
  %s1 = inlined_call_operand.vmem [shape: bf16[32,64], index: 1, kind: input, shape index: {}]
  %s2 = inlined_call_operand.hbm [shape: f32[16,64], index: 2, kind: output, shape index: {}]
  %s3 = sld [smem:[#allocation0]]
  $region26: #{transformer_forward.21} parent=0
    _
  %s5 = ssub.s32 1, %s3
  %s6 = scalar_select 0, %s5, %s3
  $region1: #{transformer_forward.21} parent=0
    #allocation3 [shape = 'u8[8192]{0}', space=vmem, size = 0x2000, scoped, tag = 'output window, operand 0, single buffered']
    #allocation4 [shape = 's32[1]{0}', space=sflag, size = 0x4, scoped, tag = 'scoped memory for transformer_forward.21']
    %7 = vsyncpa [#allocation4], 0
    // Predicated region
    $region2: #{transformer_forward.21} parent=1 // pred_check
      _
    $region3: #{transformer_forward.21} parent=1 // pred_check_branch
      %9 = sbr.rel (0) target = $region5
    $region4: #{transformer_forward.21} parent=1 // pred_region
      _
    $region5: #{transformer_forward.21} parent=1 // pred_fallthru
      _
    // Predicated region
    $region6: #{transformer_forward.21} parent=1 // pred_check
      _
    $region7: #{transformer_forward.21} parent=1 // pred_check_branch
      %11 = sbr.rel (0) target = $region9
    $region8: #{transformer_forward.21} parent=1 // pred_region
      _
    $region9: #{transformer_forward.21} parent=1 // pred_fallthru
      _
    %p13 = scmp.eq.s32.totalorder 0, 0
    // Predicated region
    $region10: #{transformer_forward.21} parent=1 // pred_check
      %p14 = pneg %p13
    $region11: #{transformer_forward.21} parent=1 // pred_check_branch
      %16 = sbr.rel (%p14) target = $region13
    $region12: #{transformer_forward.21} parent=1 // pred_region
      %vm17 = vcmask 523264
      %18 = vst.msk [vmem:[#allocation2] sm:$0xff] %vm17, 0.0
      %19 = vst.msk [vmem:[#allocation2 + $0x8] sm:$0xff] %vm17, 0.0
    $region13: #{transformer_forward.21} parent=1 // pred_fallthru
      _
    %v20 = vld [vmem:[#allocation2] sm:$0xff]
    %v21 = vld [vmem:[#allocation2 + $0x8] sm:$0xff]
    %v22 = vld [vmem:[%s0] sm:$0xf]
    %v23 = vld [vmem:[%s0 + $0x4] sm:$0xf]
    %v24 = vld [vmem:[%s1] sm:$0xf]
    %v25 = vld [vmem:[%s1 + $0x4] sm:$0xf]
    %v26 = vld [vmem:[%s1 + $0x8] sm:$0xf]
    %v27 = vld [vmem:[%s1 + $0xc] sm:$0xf]
    %v30 = vunpack.c.l.b16 %v22
    %v31 = vunpack.c.l.b16 %v23
    %v32 = vpack.c.b16 %v31, %v30
    %v37 = vunpack.c.l.b16 %v24
    %v38 = vunpack.c.l.b16 %v25
    %v39 = vunpack.c.l.b16 %v26
    %v40 = vunpack.c.l.b16 %v27
    %v41 = vpack.c.b16 %v38, %v37
    %v42 = vpack.c.b16 %v40, %v39
    %vm45 = vcmask 261120
    %v47 = vsel %vm45, %v32, 0
    %49 = vmatprep.subr.bf16.mxu0 0
    %50 = vmatpush1.bf16.msra.mxu0 %v41
    %51 = vmatprep.subr.bf16.mxu0 0
    %52 = vmatpush1.bf16.msra.mxu0 %v42
    %53 = vmatprep.subr.bf16.mxu0 0
    %54 = vmatpush1.bf16.msra.mxu0 0
    %55 = vmatprep.subr.bf16.mxu0 0
    %56 = vmatpush1.bf16.msra.mxu0 0
    %57 = vmatprep.subr.bf16.mxu0 0
    %58 = vmatpush1.bf16.msra.mxu0 0
    %59 = vmatprep.subr.bf16.mxu0 0
    %60 = vmatpush1.bf16.msra.mxu0 0
    %61 = vmatprep.subr.bf16.mxu0 0
    %62 = vmatpush1.bf16.msra.mxu0 0
    %63 = vmatprep.subr.bf16.mxu0 0
    %64 = vmatpush1.bf16.msra.mxu0 0
    %65 = vmatprep.subr.bf16.mxu0 0
    %66 = vmatpush1.bf16.msra.mxu0 0
    %67 = vmatprep.subr.bf16.mxu0 0
    %68 = vmatpush1.bf16.msra.mxu0 0
    %69 = vmatprep.subr.bf16.mxu0 0
    %70 = vmatpush1.bf16.msra.mxu0 0
    %71 = vmatprep.subr.bf16.mxu0 0
    %72 = vmatpush1.bf16.msra.mxu0 0
    %73 = vmatprep.subr.bf16.mxu0 0
    %74 = vmatpush1.bf16.msra.mxu0 0
    %75 = vmatprep.subr.bf16.mxu0 0
    %76 = vmatpush1.bf16.msra.mxu0 0
    %77 = vmatprep.subr.bf16.mxu0 0
    %78 = vmatpush1.bf16.msra.mxu0 0
    %79 = vmatprep.subr.bf16.mxu0 0
    %80 = vmatpush1.bf16.msra.mxu0 0
    %81 = vmatprep.mubr.bf16.mxu0 0
    %82 = vmatmul.mubr.bf16.gmra.mrb[0].mxu0 %v47
    %v83 = vpop.f32.mrb[0].mxu0
    %v84 = vadd.f32 0.0, %v83
    %v85 = vpop.f32.mrb[0].mxu0
    %v86 = vpop.f32.mrb[0].mxu0
    %v87 = vadd.f32 0.0, %v86
    %v88 = vpop.f32.mrb[0].mxu0
    %89 = vdwg.mxu0
    %v90 = vadd.f32 %v20, %v84
    %v91 = vadd.f32 %v21, %v87
    %vm92 = vcmask 523264
    %93 = vst.msk [vmem:[#allocation2] sm:$0xff] %vm92, %v90
    %94 = vst.msk [vmem:[#allocation2 + $0x8] sm:$0xff] %vm92, %v91
    // Predicated region
    $region14: #{transformer_forward.21} parent=1 // pred_check
      %p95 = pneg %p13
    $region15: #{transformer_forward.21} parent=1 // pred_check_branch
      %97 = sbr.rel (%p95) target = $region17
    $region16: #{transformer_forward.21} parent=1 // pred_region
      %v98 = vld [vmem:[#allocation2] sm:$0xff]
      %v99 = vld [vmem:[#allocation2 + $0x8] sm:$0xff]
      %100 = vst.msk [vmem:[#allocation3] sm:$0xff] %vm92, %v98
      %101 = vst.msk [vmem:[#allocation3 + $0x8] sm:$0xff] %vm92, %v99
    $region17: #{transformer_forward.21} parent=1 // pred_fallthru
      _
    // Predicated region
    $region18: #{transformer_forward.21} parent=1 // pred_check
      _
    $region19: #{transformer_forward.21} parent=1 // pred_check_branch
      %103 = sbr.rel (0) target = $region21
    $region20: #{transformer_forward.21} parent=1 // pred_region
      %s105 = ssub.s32 256, 256
      %106 = vsyncadd [#allocation4], %s105
      %s107 = sshll.u32 [#allocation3], 4
      %s108 = int_to_ptr.vmem [resolvable:$true] %s107
      %113 = dma.vmem_to_hbm [thread:$0]  %s108, 256, %s2, [#allocation4], 128, 128, 8
    $region21: #{transformer_forward.21} parent=1 // pred_fallthru
      _
    // Predicated region
    $region22: #{transformer_forward.21} parent=1 // pred_check
      _
    $region23: #{transformer_forward.21} parent=1 // pred_check_branch
      %115 = sbr.rel (0) target = $region25
    $region24: #{transformer_forward.21} parent=1 // pred_region
      %116 = dma.done [#allocation4], 256
    $region25: #{transformer_forward.21} parent=1 // pred_fallthru
      _
    %117 = vsyncpa [#allocation4], 1

// kernel: transformer_forward.15
$region0: #{transformer_forward.15}
  #allocation0 [shape = 'u32[]', space=smem, size = 0x4, offset = 0x4, fixed_abs, tag = 'smem constant byte address 0x4 - core index']
  #allocation1 [shape = 'u32[144,128]{1,0:T(1,128)}', space=vmem, size = 0x12000, scoped, tag = 'internal scratch']
  #allocation2 [shape = 'f32[16,32]{1,0:T(8,128)}', space=vmem, size = 0x2000, scoped, tag = 'scratch operand']
  %s0 = inlined_call_operand.vmem [shape: bf16[16,128], index: 0, kind: input, shape index: {}]
  %s1 = inlined_call_operand.vmem [shape: bf16[128,32], index: 1, kind: input, shape index: {}]
  %s2 = inlined_call_operand.vmem [shape: f32[1,32], index: 2, kind: input, shape index: {}]
  %s3 = inlined_call_operand.vmem [shape: bf16[16,32], index: 3, kind: input, shape index: {}]
  %s4 = inlined_call_operand.vmem [shape: f32[1,32], index: 4, kind: input, shape index: {}]
  %s5 = inlined_call_operand.vmem [shape: f32[1,32], index: 5, kind: input, shape index: {}]
  %s6 = inlined_call_operand.vmem [shape: bf16[16,32], index: 6, kind: output, shape index: {}]
  %s7 = sld [smem:[#allocation0]]
  $region42: #{transformer_forward.15} parent=0
    _
  %s9 = ssub.s32 1, %s7
  %s10 = scalar_select 0, %s9, %s7
  // Predicated region
  $region2: #{transformer_forward.15} parent=0 // pred_check
    _
  $region3: #{transformer_forward.15} parent=0 // pred_check_branch
    %12 = sbr.rel (0) target = $region5
  $region4: #{transformer_forward.15} parent=0 // pred_region
    _
  $region5: #{transformer_forward.15} parent=0 // pred_fallthru
    _
  // Predicated region
  $region6: #{transformer_forward.15} parent=0 // pred_check
    _
  $region7: #{transformer_forward.15} parent=0 // pred_check_branch
    %14 = sbr.rel (0) target = $region9
  $region8: #{transformer_forward.15} parent=0 // pred_region
    _
  $region9: #{transformer_forward.15} parent=0 // pred_fallthru
    _
  // Predicated region
  $region10: #{transformer_forward.15} parent=0 // pred_check
    _
  $region11: #{transformer_forward.15} parent=0 // pred_check_branch
    %16 = sbr.rel (0) target = $region13
  $region12: #{transformer_forward.15} parent=0 // pred_region
    _
  $region13: #{transformer_forward.15} parent=0 // pred_fallthru
    _
  // Predicated region
  $region14: #{transformer_forward.15} parent=0 // pred_check
    _
  $region15: #{transformer_forward.15} parent=0 // pred_check_branch
    %18 = sbr.rel (0) target = $region17
  $region16: #{transformer_forward.15} parent=0 // pred_region
    _
  $region17: #{transformer_forward.15} parent=0 // pred_fallthru
    _
  // Predicated region
  $region18: #{transformer_forward.15} parent=0 // pred_check
    _
  $region19: #{transformer_forward.15} parent=0 // pred_check_branch
    %20 = sbr.rel (0) target = $region21
  $region20: #{transformer_forward.15} parent=0 // pred_region
    _
  $region21: #{transformer_forward.15} parent=0 // pred_fallthru
    _
  // Predicated region
  $region22: #{transformer_forward.15} parent=0 // pred_check
    _
  $region23: #{transformer_forward.15} parent=0 // pred_check_branch
    %22 = sbr.rel (0) target = $region25
  $region24: #{transformer_forward.15} parent=0 // pred_region
    _
  $region25: #{transformer_forward.15} parent=0 // pred_fallthru
    _
  %p24 = scmp.eq.s32.totalorder 0, 0
  // Predicated region
  $region26: #{transformer_forward.15} parent=0 // pred_check
    %p25 = pneg %p24
  $region27: #{transformer_forward.15} parent=0 // pred_check_branch
    %27 = sbr.rel (%p25) target = $region29
  $region28: #{transformer_forward.15} parent=0 // pred_region
    %vm28 = vcmask 261120
    %29 = vst.msk [vmem:[#allocation2] sm:$0xff] %vm28, 0.0
    %30 = vst.msk [vmem:[#allocation2 + $0x8] sm:$0xff] %vm28, 0.0
  $region29: #{transformer_forward.15} parent=0 // pred_fallthru
    _
  %v31 = vld [vmem:[#allocation2] sm:$0xff]
  %v32 = vld [vmem:[#allocation2 + $0x8] sm:$0xff]
  %v33 = vld [vmem:[%s0] sm:$0xf]
  %v34 = vld [vmem:[%s0 + $0x4] sm:$0xf]
  %v35 = vld [vmem:[%s1] sm:$0xf]
  %v36 = vld [vmem:[%s1 + $0x4] sm:$0xf]
  %v37 = vld [vmem:[%s1 + $0x8] sm:$0xf]
  %v38 = vld [vmem:[%s1 + $0xc] sm:$0xf]
  %v39 = vld [vmem:[%s1 + $0x10] sm:$0xf]
  %v40 = vld [vmem:[%s1 + $0x14] sm:$0xf]
  %v41 = vld [vmem:[%s1 + $0x18] sm:$0xf]
  %v42 = vld [vmem:[%s1 + $0x1c] sm:$0xf]
  %v43 = vld [vmem:[%s1 + $0x20] sm:$0xf]
  %v44 = vld [vmem:[%s1 + $0x24] sm:$0xf]
  %v45 = vld [vmem:[%s1 + $0x28] sm:$0xf]
  %v46 = vld [vmem:[%s1 + $0x2c] sm:$0xf]
  %v47 = vld [vmem:[%s1 + $0x30] sm:$0xf]
  %v48 = vld [vmem:[%s1 + $0x34] sm:$0xf]
  %v49 = vld [vmem:[%s1 + $0x38] sm:$0xf]
  %v50 = vld [vmem:[%s1 + $0x3c] sm:$0xf]
  %v53 = vunpack.c.l.b16 %v33
  %v54 = vunpack.c.l.b16 %v34
  %v55 = vpack.c.b16 %v54, %v53
  %v73 = vunpack.c.l.b16 %v35
  %v74 = vunpack.c.l.b16 %v36
  %v75 = vunpack.c.l.b16 %v37
  %v76 = vunpack.c.l.b16 %v38
  %v77 = vunpack.c.l.b16 %v39
  %v78 = vunpack.c.l.b16 %v40
  %v79 = vunpack.c.l.b16 %v41
  %v80 = vunpack.c.l.b16 %v42
  %v81 = vunpack.c.l.b16 %v43
  %v82 = vunpack.c.l.b16 %v44
  %v83 = vunpack.c.l.b16 %v45
  %v84 = vunpack.c.l.b16 %v46
  %v85 = vunpack.c.l.b16 %v47
  %v86 = vunpack.c.l.b16 %v48
  %v87 = vunpack.c.l.b16 %v49
  %v88 = vunpack.c.l.b16 %v50
  %v89 = vpack.c.b16 %v74, %v73
  %v90 = vpack.c.b16 %v76, %v75
  %v91 = vpack.c.b16 %v78, %v77
  %v92 = vpack.c.b16 %v80, %v79
  %v93 = vpack.c.b16 %v82, %v81
  %v94 = vpack.c.b16 %v84, %v83
  %v95 = vpack.c.b16 %v86, %v85
  %v96 = vpack.c.b16 %v88, %v87
  %105 = vmatprep.subr.bf16.mxu0 0
  %106 = vmatpush1.bf16.msra.mxu0 %v89
  %107 = vmatprep.subr.bf16.mxu0 0
  %108 = vmatpush1.bf16.msra.mxu0 %v90
  %109 = vmatprep.subr.bf16.mxu0 0
  %110 = vmatpush1.bf16.msra.mxu0 %v91
  %111 = vmatprep.subr.bf16.mxu0 0
  %112 = vmatpush1.bf16.msra.mxu0 %v92
  %113 = vmatprep.subr.bf16.mxu0 0
  %114 = vmatpush1.bf16.msra.mxu0 %v93
  %115 = vmatprep.subr.bf16.mxu0 0
  %116 = vmatpush1.bf16.msra.mxu0 %v94
  %117 = vmatprep.subr.bf16.mxu0 0
  %118 = vmatpush1.bf16.msra.mxu0 %v95
  %119 = vmatprep.subr.bf16.mxu0 0
  %120 = vmatpush1.bf16.msra.mxu0 %v96
  %121 = vmatprep.subr.bf16.mxu0 0
  %122 = vmatpush1.bf16.msra.mxu0 0
  %123 = vmatprep.subr.bf16.mxu0 0
  %124 = vmatpush1.bf16.msra.mxu0 0
  %125 = vmatprep.subr.bf16.mxu0 0
  %126 = vmatpush1.bf16.msra.mxu0 0
  %127 = vmatprep.subr.bf16.mxu0 0
  %128 = vmatpush1.bf16.msra.mxu0 0
  %129 = vmatprep.subr.bf16.mxu0 0
  %130 = vmatpush1.bf16.msra.mxu0 0
  %131 = vmatprep.subr.bf16.mxu0 0
  %132 = vmatpush1.bf16.msra.mxu0 0
  %133 = vmatprep.subr.bf16.mxu0 0
  %134 = vmatpush1.bf16.msra.mxu0 0
  %135 = vmatprep.subr.bf16.mxu0 0
  %136 = vmatpush1.bf16.msra.mxu0 0
  %137 = vmatprep.mubr.bf16.mxu0 0
  %138 = vmatmul.mubr.bf16.gmra.mrb[0].mxu0 %v55
  %v139 = vpop.f32.mrb[0].mxu0
  %v140 = vadd.f32 0.0, %v139
  %v141 = vpop.f32.mrb[0].mxu0
  %v142 = vpop.f32.mrb[0].mxu0
  %v143 = vadd.f32 0.0, %v142
  %v144 = vpop.f32.mrb[0].mxu0
  %145 = vdwg.mxu0
  %v146 = vadd.f32 %v31, %v140
  %v147 = vadd.f32 %v32, %v143
  %vm148 = vcmask 261120
  %149 = vst.msk [vmem:[#allocation2] sm:$0xff] %vm148, %v146
  %150 = vst.msk [vmem:[#allocation2 + $0x8] sm:$0xff] %vm148, %v147
  // Predicated region
  $region30: #{transformer_forward.15} parent=0 // pred_check
    %p151 = pneg %p24
  $region31: #{transformer_forward.15} parent=0 // pred_check_branch
    %153 = sbr.rel (%p151) target = $region33
  $region32: #{transformer_forward.15} parent=0 // pred_region
    %v154 = vld [vmem:[#allocation2] sm:$0xff]
    %v155 = vld [vmem:[#allocation2 + $0x8] sm:$0xff]
    %v156 = vld [vmem:[%s2] sm:$0x1]
    %v158 = vlaneseq
    %v159 = vshrl.u32 %v158, 7
    %v160 = vsub.s32 0, %v159
    %v161 = vrot.slane %v156, %v160
    %v163 = vadd.f32 %v154, %v161
    %v164 = vadd.f32 %v155, %v161
    %v165 = vld [vmem:[%s3] sm:$0xf]
    %v166 = vld [vmem:[%s3 + $0x4] sm:$0xf]
    %v167 = vunpack.c.l.bf16 %v165
    %v168 = vunpack.c.l.bf16 %v166
    %v169 = vadd.f32 %v163, %v167
    %v170 = vadd.f32 %v164, %v168
    %v171 = vsel %vm148, %v169, 0.0
    %172 = vadd.xlane.f32.xlu0 %v171
    %v173 = vpop.xlane.xlu0 %172
    %v174 = vsel %vm148, %v170, 0.0
    %175 = vadd.xlane.f32.xlu0 %v174
    %v176 = vpop.xlane.xlu0 %175
    %v177 = vrcp.pop 32.0
    %v178 = vmul.f32 %v173, %v177
    %v179 = vmul.f32 %v176, %v177
    %v180 = vsub.f32 %v169, %v178
    %v181 = vsub.f32 %v170, %v179
    %v182 = vmul.f32 %v180, %v180
    %v183 = vmul.f32 %v181, %v181
    %v184 = vsel %vm148, %v182, 0.0
    %185 = vadd.xlane.f32.xlu0 %v184
    %v186 = vpop.xlane.xlu0 %185
    %v187 = vsel %vm148, %v183, 0.0
    %188 = vadd.xlane.f32.xlu0 %v187
    %v189 = vpop.xlane.xlu0 %188
    %v190 = vmul.f32 %v186, %v177
    %v191 = vmul.f32 %v189, %v177
    %v192 = vadd.f32 %v190, 1e-05
    %v193 = vadd.f32 %v191, 1e-05
    %v194 = vrsqrt.pop %v192
    %v195 = vrsqrt.pop %v193
    %v196 = vmul.f32 %v180, %v194
    %v197 = vmul.f32 %v181, %v195
    %v198 = vld [vmem:[%s4] sm:$0x1]
    %v200 = vlaneseq
    %v201 = vshrl.u32 %v200, 7
    %v202 = vsub.s32 0, %v201
    %v203 = vrot.slane %v198, %v202
    %v205 = vmul.f32 %v196, %v203
    %v206 = vmul.f32 %v197, %v203
    %v207 = vld [vmem:[%s5] sm:$0x1]
    %v209 = vlaneseq
    %v210 = vshrl.u32 %v209, 7
    %v211 = vsub.s32 0, %v210
    %v212 = vrot.slane %v207, %v211
    %v214 = vadd.f32 %v205, %v212
    %v215 = vadd.f32 %v206, %v212
    %v216 = vpack.c.bf16 %v215, %v214
    %v218 = vunpack.c.l.b16 %v216
    %v219 = vunpack.c.h.b16 %v216
    %v220 = vpack.c.b16 %v218, %v218
    %v221 = vpack.c.b16 %v219, %v219
    %vm224 = vcmask 257024
    %225 = vst.msk [vmem:[%s6] sm:$0xf] %vm224, %v220
    %226 = vst.msk [vmem:[%s6 + $0x4] sm:$0xf] %vm224, %v221
  $region33: #{transformer_forward.15} parent=0 // pred_fallthru
    _
  // Predicated region
  $region34: #{transformer_forward.15} parent=0 // pred_check
    _
  $region35: #{transformer_forward.15} parent=0 // pred_check_branch
    %228 = sbr.rel (0) target = $region37
  $region36: #{transformer_forward.15} parent=0 // pred_region
    _
  $region37: #{transformer_forward.15} parent=0 // pred_fallthru
    _
  // Predicated region
  $region38: #{transformer_forward.15} parent=0 // pred_check
    _
  $region39: #{transformer_forward.15} parent=0 // pred_check_branch
    %230 = sbr.rel (0) target = $region41
  $region40: #{transformer_forward.15} parent=0 // pred_region
    _
  $region41: #{transformer_forward.15} parent=0 // pred_fallthru
    _

</llo_original>
